<compile_context>
chip_gen: v5e
topology: v5e:2x2
jax: 0.10.0
libtpu: 0.0.40
codegen_flags: <defaults>
</compile_context>

<pallas_src>
import functools
import math

import jax
import jax.numpy as jnp
from jax.experimental import pallas as pl
from jax.experimental.pallas import tpu as pltpu


def actor_kernel(state_ref, act_ref, h0_ref, c0_ref,
                 w12_ref, w2a_ref, b12_ref,
                 wih_ref, whh_ref, blstm_ref,
                 w3f_ref, w3l_ref, b3_ref, w4_ref, b4_ref,
                 x_out_ref, hn_ref, cn_ref,
                 houts_scr,
                 *, seq_len, batch, num_layers, hidden_dim, max_action):
    T, B, L, H = seq_len, batch, num_layers, hidden_dim

    xs = state_ref[...]          # (T*B, S)
    xa = act_ref[...]            # (T*B, A)

    # ---- Hoisted, non-recurrent matmuls over all timesteps at once ----------
    # linear1 and linear2 fused column-wise:
    #   pre[:, :H] = relu(state @ w1 + b1)                    (fc branch)
    #   pre[:, H:] = relu(state @ w2s + act @ w2a + b2)       (lstm branch in)
    pre = jax.nn.relu(
        jnp.dot(xs, w12_ref[...], preferred_element_type=jnp.float32)
        + jnp.dot(xa, w2a_ref[...], preferred_element_type=jnp.float32)
        + b12_ref[...])                                          # (T*B, 2H)
    fc_all = pre[:, :H]                                          # (T*B, H)
    layer_in = pre[:, H:]                                        # (T*B, H)

    # ---- Multi-layer LSTM. Gate columns were reordered in the wrapper to
    #      [i, f, o, g]: one sigmoid over lanes [0,3H), one tanh over [3H,4H).
    for l in range(L):
        # Input->gate contribution for every timestep in one matmul, with the
        # combined (bih + bhh) bias folded in.
        xw_all = (jnp.dot(layer_in, wih_ref[l], preferred_element_type=jnp.float32)
                  + blstm_ref[l])                                # (T*B, 4H)
        whh = whh_ref[l]                                         # (H, 4H)
        h = h0_ref[l]                                            # (B, H)
        c = c0_ref[l]                                            # (B, H)
        for t in range(T):                                       # sequential recurrence
            gates = (xw_all[t * B:(t + 1) * B, :]
                     + jnp.dot(h, whh, preferred_element_type=jnp.float32))  # (B, 4H)
            sg = jax.nn.sigmoid(gates[:, :3 * H])                # i, f, o: one EUP pass
            g_g = jnp.tanh(gates[:, 3 * H:])                     # g: one EUP pass
            i_g = sg[:, 0 * H:1 * H]
            f_g = sg[:, 1 * H:2 * H]
            o_g = sg[:, 2 * H:3 * H]
            c = f_g * c + i_g * g_g
            h = o_g * jnp.tanh(c)
            houts_scr[t * B:(t + 1) * B, :] = h
        hn_ref[l] = h
        cn_ref[l] = c
        layer_in = houts_scr[...]                                # (T*B, H)
        # TODO(synk): inter-layer dropout (training mode only) not applied.

    # ---- Tail: merged -> linear3 -> relu -> linear4 -> max_action * tanh ----
    y = jax.nn.relu(
        jnp.dot(fc_all, w3f_ref[...], preferred_element_type=jnp.float32)
        + jnp.dot(layer_in, w3l_ref[...], preferred_element_type=jnp.float32)
        + b3_ref[...])                                           # (T*B, H)
    x_out_ref[...] = max_action * jnp.tanh(
        jnp.dot(y, w4_ref[...], preferred_element_type=jnp.float32) + b4_ref[...])


def actor_forward(state, last_action, hidden_in, params, *,
                  max_action, num_layers, hidden_dim):
    """state: (B, T, S); last_action: (B, T, A); hidden_in: ((L,B,H), (L,B,H))."""
    B, T, S = state.shape
    A = last_action.shape[-1]
    L, H = num_layers, hidden_dim
    h0, c0 = hidden_in

    # Time-major, flattened to (T*B, feat) so all hoisted matmuls are batched.
    state2d = jnp.transpose(state, (1, 0, 2)).reshape(T * B, S)
    act2d = jnp.transpose(last_action, (1, 0, 2)).reshape(T * B, A)

    # --- Wrapper-side weight layout plumbing (no compute hoisting) -----------
    # linear1 + linear2 fused column-wise; action rows of the fc half are zero.
    w12 = jnp.concatenate([params["w1"], params["w2"][:S]], axis=1)          # (S, 2H)
    w2a = jnp.concatenate(
        [jnp.zeros((A, H), jnp.float32), params["w2"][S:]], axis=1)          # (A, 2H)
    b12 = jnp.concatenate([params["b1"], params["b2"]], axis=1)              # (1, 2H)

    # LSTM gate columns reordered [i,f,g,o] -> [i,f,o,g]; bih+bhh pre-summed.
    def reorder(w):
        return jnp.concatenate(
            [w[..., :2 * H], w[..., 3 * H:], w[..., 2 * H:3 * H]], axis=-1)
    wih = reorder(params["wih"])                                             # (L, H, 4H)
    whh = reorder(params["whh"])                                             # (L, H, 4H)
    blstm = reorder(params["bih"] + params["bhh"])                           # (L, 1, 4H)

    # Concat-free split of linear3.
    w3f, w3l = params["w3"][:H], params["w3"][H:]

    inputs = (state2d, act2d, h0, c0,
              w12, w2a, b12,
              wih, whh, blstm,
              w3f, w3l, params["b3"], params["w4"], params["b4"])

    kernel = functools.partial(actor_kernel, seq_len=T, batch=B, num_layers=L,
                               hidden_dim=H, max_action=max_action)

    # Single kernel invocation (no grid): every operand is a whole-array VMEM
    # block; all state lives in registers / VMEM scratch for the full sequence.
    # TODO(synk): for large production batches on v7x, add a leading "parallel"
    # grid axis over batch tiles so both TensorCores are used.
    x2d, hn, cn = pl.pallas_call(
        kernel,
        out_shape=(jax.ShapeDtypeStruct((T * B, A), jnp.float32),
                   jax.ShapeDtypeStruct((L, B, H), jnp.float32),
                   jax.ShapeDtypeStruct((L, B, H), jnp.float32)),
        in_specs=[pl.BlockSpec(memory_space=pltpu.MemorySpace.VMEM)
                  for _ in inputs],
        out_specs=(pl.BlockSpec(memory_space=pltpu.MemorySpace.VMEM),
                   pl.BlockSpec(memory_space=pltpu.MemorySpace.VMEM),
                   pl.BlockSpec(memory_space=pltpu.MemorySpace.VMEM)),
        scratch_shapes=[pltpu.VMEM((T * B, H), jnp.float32)],
    )(*inputs)

    x = jnp.transpose(x2d.reshape(T, B, A), (1, 0, 2))           # (B, T, A)
    return x, (hn, cn)


def init_params(key, state_dim, action_dim, hidden_dim, num_layers):
    """Deterministic parameter init mirroring the module's shapes.

    Linear layers: xavier_uniform weights, zero bias (weights_init_).
    LSTM: PyTorch default uniform(-1/sqrt(H), 1/sqrt(H)).
    Weights are stored transposed (in_features, out_features) for row-major matmul.
    """
    S, A, H, L = state_dim, action_dim, hidden_dim, num_layers
    keys = jax.random.split(key, 8 + 4 * L)

    def xavier(k, fan_in, fan_out):
        bound = math.sqrt(6.0 / (fan_in + fan_out))
        return jax.random.uniform(k, (fan_in, fan_out), jnp.float32, -bound, bound)

    p = {}
    p["w1"] = xavier(keys[0], S, H)
    p["b1"] = jnp.zeros((1, H), jnp.float32)
    p["w2"] = xavier(keys[1], S + A, H)
    p["b2"] = jnp.zeros((1, H), jnp.float32)
    p["w3"] = xavier(keys[2], 2 * H, H)
    p["b3"] = jnp.zeros((1, H), jnp.float32)
    p["w4"] = xavier(keys[3], H, A)
    p["b4"] = jnp.zeros((1, A), jnp.float32)

    u = 1.0 / math.sqrt(H)
    wih, whh, bih, bhh = [], [], [], []
    for l in range(L):
        k0, k1, k2, k3 = keys[4 + 4 * l: 8 + 4 * l]
        wih.append(jax.random.uniform(k0, (H, 4 * H), jnp.float32, -u, u))
        whh.append(jax.random.uniform(k1, (H, 4 * H), jnp.float32, -u, u))
        bih.append(jax.random.uniform(k2, (1, 4 * H), jnp.float32, -u, u))
        bhh.append(jax.random.uniform(k3, (1, 4 * H), jnp.float32, -u, u))
    p["wih"] = jnp.stack(wih)   # (L, H, 4H) in PyTorch gate order [i,f,g,o]
    p["whh"] = jnp.stack(whh)   # (L, H, 4H)
    p["bih"] = jnp.stack(bih)   # (L, 1, 4H)
    p["bhh"] = jnp.stack(bhh)   # (L, 1, 4H)
    return p


def actor_forward_ref(state, last_action, hidden_in, params, *,
                      max_action, num_layers, hidden_dim):
    """Pure-JAX reference of the same forward pass (for correctness check)."""
    H, L = hidden_dim, num_layers
    s = jnp.transpose(state, (1, 0, 2))          # (T, B, S)
    a = jnp.transpose(last_action, (1, 0, 2))    # (T, B, A)
    fc = jax.nn.relu(jnp.einsum("tbs,sh->tbh", s, params["w1"]) + params["b1"])
    lin = jax.nn.relu(
        jnp.einsum("tbs,sh->tbh", jnp.concatenate([s, a], -1), params["w2"])
        + params["b2"])

    h, c = hidden_in
    h, c = list(h), list(c)
    T = s.shape[0]
    layer_in = lin
    for l in range(L):
        outs = []
        hl, cl = h[l], c[l]
        for t in range(T):
            gates = (layer_in[t] @ params["wih"][l] + params["bih"][l]
                     + hl @ params["whh"][l] + params["bhh"][l])
            i_g = jax.nn.sigmoid(gates[:, 0 * H:1 * H])
            f_g = jax.nn.sigmoid(gates[:, 1 * H:2 * H])
            g_g = jnp.tanh(gates[:, 2 * H:3 * H])
            o_g = jax.nn.sigmoid(gates[:, 3 * H:4 * H])
            cl = f_g * cl + i_g * g_g
            hl = o_g * jnp.tanh(cl)
            outs.append(hl)
        h[l], c[l] = hl, cl
        layer_in = jnp.stack(outs)
    merged = jnp.concatenate([fc, layer_in], -1)
    y = jax.nn.relu(jnp.einsum("tbm,mh->tbh", merged, params["w3"]) + params["b3"])
    x = max_action * jnp.tanh(jnp.einsum("tbh,ha->tba", y, params["w4"]) + params["b4"])
    return jnp.transpose(x, (1, 0, 2)), (jnp.stack(h), jnp.stack(c))


if __name__ == "__main__":
    # Small shapes consistent with the module's forward.
    B, T = 2, 8
    state_dim, action_dim = 12, 4
    hidden_dim, num_layers = 32, 2
    max_action = 1.0

    key = jax.random.PRNGKey(0)
    kp, ks, ka, kh, kc = jax.random.split(key, 5)

    params = init_params(kp, state_dim, action_dim, hidden_dim, num_layers)
    state = jax.random.normal(ks, (B, T, state_dim), jnp.float32)
    last_action = jax.random.normal(ka, (B, T, action_dim), jnp.float32)
    h0 = jax.random.normal(kh, (num_layers, B, hidden_dim), jnp.float32)
    c0 = jax.random.normal(kc, (num_layers, B, hidden_dim), jnp.float32)

    fwd = jax.jit(functools.partial(
        actor_forward, max_action=max_action, num_layers=num_layers,
        hidden_dim=hidden_dim))

    x, (hn, cn) = fwd(state, last_action, (h0, c0), params)
    jax.block_until_ready((x, hn, cn))

    x_ref, (hn_ref, cn_ref) = actor_forward_ref(
        state, last_action, (h0, c0), params,
        max_action=max_action, num_layers=num_layers, hidden_dim=hidden_dim)

    assert x.shape == (B, T, action_dim)
    assert hn.shape == (num_layers, B, hidden_dim)
    assert cn.shape == (num_layers, B, hidden_dim)
    assert jnp.allclose(x, x_ref, atol=1e-4, rtol=1e-4)
    assert jnp.allclose(hn, hn_ref, atol=1e-4, rtol=1e-4)
    assert jnp.allclose(cn, cn_ref, atol=1e-4, rtol=1e-4)

    print("KERNEL_OK")
</pallas_src>

<mosaic_0001>
module attributes {stable_mosaic.version = 11 : i64} {
  func.func @actor_kernel(%arg0: memref<16x12xf32, #tpu.memory_space<vmem>>, %arg1: memref<16x4xf32, #tpu.memory_space<vmem>>, %arg2: memref<2x2x32xf32, #tpu.memory_space<vmem>>, %arg3: memref<2x2x32xf32, #tpu.memory_space<vmem>>, %arg4: memref<12x64xf32, #tpu.memory_space<vmem>>, %arg5: memref<4x64xf32, #tpu.memory_space<vmem>>, %arg6: memref<1x64xf32, #tpu.memory_space<vmem>>, %arg7: memref<2x32x128xf32, #tpu.memory_space<vmem>>, %arg8: memref<2x32x128xf32, #tpu.memory_space<vmem>>, %arg9: memref<2x1x128xf32, #tpu.memory_space<vmem>>, %arg10: memref<32x32xf32, #tpu.memory_space<vmem>>, %arg11: memref<32x32xf32, #tpu.memory_space<vmem>>, %arg12: memref<1x32xf32, #tpu.memory_space<vmem>>, %arg13: memref<32x4xf32, #tpu.memory_space<vmem>>, %arg14: memref<1x4xf32, #tpu.memory_space<vmem>>, %arg15: memref<16x4xf32, #tpu.memory_space<vmem>>, %arg16: memref<2x2x32xf32, #tpu.memory_space<vmem>>, %arg17: memref<2x2x32xf32, #tpu.memory_space<vmem>>, %arg18: memref<16x32xf32, #tpu.memory_space<vmem>>) attributes {dimension_semantics = [], scalar_prefetch = 0 : i64, scratch_operands = 1 : i64, tpu.core_type = #tpu.core_type<tc>} {
    %c0 = arith.constant 0 : index
    %c0_0 = arith.constant 0 : index
    %0 = vector.load %arg0[%c0, %c0_0] : memref<16x12xf32, #tpu.memory_space<vmem>>, vector<16x12xf32>
    %c0_1 = arith.constant 0 : index
    %c0_2 = arith.constant 0 : index
    %1 = vector.load %arg1[%c0_1, %c0_2] : memref<16x4xf32, #tpu.memory_space<vmem>>, vector<16x4xf32>
    %c0_3 = arith.constant 0 : index
    %c0_4 = arith.constant 0 : index
    %2 = vector.load %arg4[%c0_3, %c0_4] : memref<12x64xf32, #tpu.memory_space<vmem>>, vector<12x64xf32>
    %cst = arith.constant dense<0.000000e+00> : vector<16x64xf32>
    %3 = tpu.matmul %0, %2, %cst {dimension_numbers = #tpu.dot_dimension_numbers<[1], [0], [0], [1], [0, 0, 1, 1], [], []>} : vector<16x12xf32>, vector<12x64xf32>, vector<16x64xf32> -> vector<16x64xf32>
    %c0_5 = arith.constant 0 : index
    %c0_6 = arith.constant 0 : index
    %4 = vector.load %arg5[%c0_5, %c0_6] : memref<4x64xf32, #tpu.memory_space<vmem>>, vector<4x64xf32>
    %cst_7 = arith.constant dense<0.000000e+00> : vector<16x64xf32>
    %5 = tpu.matmul %1, %4, %cst_7 {dimension_numbers = #tpu.dot_dimension_numbers<[1], [0], [0], [1], [0, 0, 1, 1], [], []>} : vector<16x4xf32>, vector<4x64xf32>, vector<16x64xf32> -> vector<16x64xf32>
    %6 = arith.addf %3, %5 : vector<16x64xf32>
    %c0_8 = arith.constant 0 : index
    %c0_9 = arith.constant 0 : index
    %7 = vector.load %arg6[%c0_8, %c0_9] : memref<1x64xf32, #tpu.memory_space<vmem>>, vector<1x64xf32>
    %8 = vector.broadcast %7 : vector<1x64xf32> to vector<16x64xf32>
    %9 = arith.addf %6, %8 : vector<16x64xf32>
    %cst_10 = arith.constant 0.000000e+00 : f32
    %10 = vector.broadcast %cst_10 : f32 to vector<16x64xf32>
    %11 = arith.maximumf %9, %10 : vector<16x64xf32>
    %12 = vector.extract_strided_slice %11 {offsets = [0, 0], sizes = [16, 32], strides = [1, 1]} : vector<16x64xf32> to vector<16x32xf32>
    %13 = vector.extract_strided_slice %11 {offsets = [0, 32], sizes = [16, 32], strides = [1, 1]} : vector<16x64xf32> to vector<16x32xf32>
    %c0_11 = arith.constant 0 : index
    %c0_12 = arith.constant 0 : index
    %c0_13 = arith.constant 0 : index
    %14 = vector.load %arg7[%c0_11, %c0_12, %c0_13] : memref<2x32x128xf32, #tpu.memory_space<vmem>>, vector<1x32x128xf32>
    %15 = vector.shape_cast %14 : vector<1x32x128xf32> to vector<32x128xf32>
    %cst_14 = arith.constant dense<0.000000e+00> : vector<16x128xf32>
    %16 = tpu.matmul %13, %15, %cst_14 {dimension_numbers = #tpu.dot_dimension_numbers<[1], [0], [0], [1], [0, 0, 1, 1], [], []>} : vector<16x32xf32>, vector<32x128xf32>, vector<16x128xf32> -> vector<16x128xf32>
    %c0_15 = arith.constant 0 : index
    %c0_16 = arith.constant 0 : index
    %c0_17 = arith.constant 0 : index
    %17 = vector.load %arg9[%c0_15, %c0_16, %c0_17] : memref<2x1x128xf32, #tpu.memory_space<vmem>>, vector<1x1x128xf32>
    %18 = vector.shape_cast %17 : vector<1x1x128xf32> to vector<1x128xf32>
    %19 = vector.broadcast %18 : vector<1x128xf32> to vector<16x128xf32>
    %20 = arith.addf %16, %19 : vector<16x128xf32>
    %c0_18 = arith.constant 0 : index
    %c0_19 = arith.constant 0 : index
    %c0_20 = arith.constant 0 : index
    %21 = vector.load %arg8[%c0_18, %c0_19, %c0_20] : memref<2x32x128xf32, #tpu.memory_space<vmem>>, vector<1x32x128xf32>
    %22 = vector.shape_cast %21 : vector<1x32x128xf32> to vector<32x128xf32>
    %c0_21 = arith.constant 0 : index
    %c0_22 = arith.constant 0 : index
    %c0_23 = arith.constant 0 : index
    %23 = vector.load %arg2[%c0_21, %c0_22, %c0_23] : memref<2x2x32xf32, #tpu.memory_space<vmem>>, vector<1x2x32xf32>
    %24 = vector.shape_cast %23 : vector<1x2x32xf32> to vector<2x32xf32>
    %c0_24 = arith.constant 0 : index
    %c0_25 = arith.constant 0 : index
    %c0_26 = arith.constant 0 : index
    %25 = vector.load %arg3[%c0_24, %c0_25, %c0_26] : memref<2x2x32xf32, #tpu.memory_space<vmem>>, vector<1x2x32xf32>
    %26 = vector.shape_cast %25 : vector<1x2x32xf32> to vector<2x32xf32>
    %27 = vector.extract_strided_slice %20 {offsets = [0, 0], sizes = [2, 128], strides = [1, 1]} : vector<16x128xf32> to vector<2x128xf32>
    %cst_27 = arith.constant dense<0.000000e+00> : vector<2x128xf32>
    %28 = tpu.matmul %24, %22, %cst_27 {dimension_numbers = #tpu.dot_dimension_numbers<[1], [0], [0], [1], [0, 0, 1, 1], [], []>} : vector<2x32xf32>, vector<32x128xf32>, vector<2x128xf32> -> vector<2x128xf32>
    %29 = arith.addf %27, %28 : vector<2x128xf32>
    %30 = vector.extract_strided_slice %29 {offsets = [0, 0], sizes = [2, 96], strides = [1, 1]} : vector<2x128xf32> to vector<2x96xf32>
    %31 = arith.negf %30 : vector<2x96xf32>
    %32 = math.exp %31 : vector<2x96xf32>
    %cst_28 = arith.constant 1.000000e+00 : f32
    %33 = vector.broadcast %cst_28 : f32 to vector<2x96xf32>
    %34 = arith.addf %33, %32 : vector<2x96xf32>
    %35 = arith.divf %33, %34 : vector<2x96xf32>
    %36 = vector.extract_strided_slice %29 {offsets = [0, 96], sizes = [2, 32], strides = [1, 1]} : vector<2x128xf32> to vector<2x32xf32>
    %37 = math.tanh %36 : vector<2x32xf32>
    %38 = vector.extract_strided_slice %35 {offsets = [0, 0], sizes = [2, 32], strides = [1, 1]} : vector<2x96xf32> to vector<2x32xf32>
    %39 = vector.extract_strided_slice %35 {offsets = [0, 32], sizes = [2, 32], strides = [1, 1]} : vector<2x96xf32> to vector<2x32xf32>
    %40 = vector.extract_strided_slice %35 {offsets = [0, 64], sizes = [2, 32], strides = [1, 1]} : vector<2x96xf32> to vector<2x32xf32>
    %41 = arith.mulf %39, %26 : vector<2x32xf32>
    %42 = arith.mulf %38, %37 : vector<2x32xf32>
    %43 = arith.addf %41, %42 : vector<2x32xf32>
    %44 = math.tanh %43 : vector<2x32xf32>
    %45 = arith.mulf %40, %44 : vector<2x32xf32>
    %c0_29 = arith.constant 0 : index
    %c0_30 = arith.constant 0 : index
    %46 = vector.load %arg18[%c0_29, %c0_30] : memref<16x32xf32, #tpu.memory_space<vmem>>, vector<2x32xf32>
    tpu.vector_store %arg18[%c0_29, %c0_30], %45 {strides = array<i32>} : memref<16x32xf32, #tpu.memory_space<vmem>>, vector<2x32xf32>,
    %47 = vector.extract_strided_slice %20 {offsets = [2, 0], sizes = [2, 128], strides = [1, 1]} : vector<16x128xf32> to vector<2x128xf32>
    %cst_31 = arith.constant dense<0.000000e+00> : vector<2x128xf32>
    %48 = tpu.matmul %45, %22, %cst_31 {dimension_numbers = #tpu.dot_dimension_numbers<[1], [0], [0], [1], [0, 0, 1, 1], [], []>} : vector<2x32xf32>, vector<32x128xf32>, vector<2x128xf32> -> vector<2x128xf32>
    %49 = arith.addf %47, %48 : vector<2x128xf32>
    %50 = vector.extract_strided_slice %49 {offsets = [0, 0], sizes = [2, 96], strides = [1, 1]} : vector<2x128xf32> to vector<2x96xf32>
    %51 = arith.negf %50 : vector<2x96xf32>
    %52 = math.exp %51 : vector<2x96xf32>
    %cst_32 = arith.constant 1.000000e+00 : f32
    %53 = vector.broadcast %cst_32 : f32 to vector<2x96xf32>
    %54 = arith.addf %53, %52 : vector<2x96xf32>
    %55 = arith.divf %53, %54 : vector<2x96xf32>
    %56 = vector.extract_strided_slice %49 {offsets = [0, 96], sizes = [2, 32], strides = [1, 1]} : vector<2x128xf32> to vector<2x32xf32>
    %57 = math.tanh %56 : vector<2x32xf32>
    %58 = vector.extract_strided_slice %55 {offsets = [0, 0], sizes = [2, 32], strides = [1, 1]} : vector<2x96xf32> to vector<2x32xf32>
    %59 = vector.extract_strided_slice %55 {offsets = [0, 32], sizes = [2, 32], strides = [1, 1]} : vector<2x96xf32> to vector<2x32xf32>
    %60 = vector.extract_strided_slice %55 {offsets = [0, 64], sizes = [2, 32], strides = [1, 1]} : vector<2x96xf32> to vector<2x32xf32>
    %61 = arith.mulf %59, %43 : vector<2x32xf32>
    %62 = arith.mulf %58, %57 : vector<2x32xf32>
    %63 = arith.addf %61, %62 : vector<2x32xf32>
    %64 = math.tanh %63 : vector<2x32xf32>
    %65 = arith.mulf %60, %64 : vector<2x32xf32>
    %c2 = arith.constant 2 : index
    %c0_33 = arith.constant 0 : index
    %66 = vector.load %arg18[%c2, %c0_33] : memref<16x32xf32, #tpu.memory_space<vmem>>, vector<2x32xf32>
    tpu.vector_store %arg18[%c2, %c0_33], %65 {strides = array<i32>} : memref<16x32xf32, #tpu.memory_space<vmem>>, vector<2x32xf32>,
    %67 = vector.extract_strided_slice %20 {offsets = [4, 0], sizes = [2, 128], strides = [1, 1]} : vector<16x128xf32> to vector<2x128xf32>
    %cst_34 = arith.constant dense<0.000000e+00> : vector<2x128xf32>
    %68 = tpu.matmul %65, %22, %cst_34 {dimension_numbers = #tpu.dot_dimension_numbers<[1], [0], [0], [1], [0, 0, 1, 1], [], []>} : vector<2x32xf32>, vector<32x128xf32>, vector<2x128xf32> -> vector<2x128xf32>
    %69 = arith.addf %67, %68 : vector<2x128xf32>
    %70 = vector.extract_strided_slice %69 {offsets = [0, 0], sizes = [2, 96], strides = [1, 1]} : vector<2x128xf32> to vector<2x96xf32>
    %71 = arith.negf %70 : vector<2x96xf32>
    %72 = math.exp %71 : vector<2x96xf32>
    %cst_35 = arith.constant 1.000000e+00 : f32
    %73 = vector.broadcast %cst_35 : f32 to vector<2x96xf32>
    %74 = arith.addf %73, %72 : vector<2x96xf32>
    %75 = arith.divf %73, %74 : vector<2x96xf32>
    %76 = vector.extract_strided_slice %69 {offsets = [0, 96], sizes = [2, 32], strides = [1, 1]} : vector<2x128xf32> to vector<2x32xf32>
    %77 = math.tanh %76 : vector<2x32xf32>
    %78 = vector.extract_strided_slice %75 {offsets = [0, 0], sizes = [2, 32], strides = [1, 1]} : vector<2x96xf32> to vector<2x32xf32>
    %79 = vector.extract_strided_slice %75 {offsets = [0, 32], sizes = [2, 32], strides = [1, 1]} : vector<2x96xf32> to vector<2x32xf32>
    %80 = vector.extract_strided_slice %75 {offsets = [0, 64], sizes = [2, 32], strides = [1, 1]} : vector<2x96xf32> to vector<2x32xf32>
    %81 = arith.mulf %79, %63 : vector<2x32xf32>
    %82 = arith.mulf %78, %77 : vector<2x32xf32>
    %83 = arith.addf %81, %82 : vector<2x32xf32>
    %84 = math.tanh %83 : vector<2x32xf32>
    %85 = arith.mulf %80, %84 : vector<2x32xf32>
    %c4 = arith.constant 4 : index
    %c0_36 = arith.constant 0 : index
    %86 = vector.load %arg18[%c4, %c0_36] : memref<16x32xf32, #tpu.memory_space<vmem>>, vector<2x32xf32>
    tpu.vector_store %arg18[%c4, %c0_36], %85 {strides = array<i32>} : memref<16x32xf32, #tpu.memory_space<vmem>>, vector<2x32xf32>,
    %87 = vector.extract_strided_slice %20 {offsets = [6, 0], sizes = [2, 128], strides = [1, 1]} : vector<16x128xf32> to vector<2x128xf32>
    %cst_37 = arith.constant dense<0.000000e+00> : vector<2x128xf32>
    %88 = tpu.matmul %85, %22, %cst_37 {dimension_numbers = #tpu.dot_dimension_numbers<[1], [0], [0], [1], [0, 0, 1, 1], [], []>} : vector<2x32xf32>, vector<32x128xf32>, vector<2x128xf32> -> vector<2x128xf32>
    %89 = arith.addf %87, %88 : vector<2x128xf32>
    %90 = vector.extract_strided_slice %89 {offsets = [0, 0], sizes = [2, 96], strides = [1, 1]} : vector<2x128xf32> to vector<2x96xf32>
    %91 = arith.negf %90 : vector<2x96xf32>
    %92 = math.exp %91 : vector<2x96xf32>
    %cst_38 = arith.constant 1.000000e+00 : f32
    %93 = vector.broadcast %cst_38 : f32 to vector<2x96xf32>
    %94 = arith.addf %93, %92 : vector<2x96xf32>
    %95 = arith.divf %93, %94 : vector<2x96xf32>
    %96 = vector.extract_strided_slice %89 {offsets = [0, 96], sizes = [2, 32], strides = [1, 1]} : vector<2x128xf32> to vector<2x32xf32>
    %97 = math.tanh %96 : vector<2x32xf32>
    %98 = vector.extract_strided_slice %95 {offsets = [0, 0], sizes = [2, 32], strides = [1, 1]} : vector<2x96xf32> to vector<2x32xf32>
    %99 = vector.extract_strided_slice %95 {offsets = [0, 32], sizes = [2, 32], strides = [1, 1]} : vector<2x96xf32> to vector<2x32xf32>
    %100 = vector.extract_strided_slice %95 {offsets = [0, 64], sizes = [2, 32], strides = [1, 1]} : vector<2x96xf32> to vector<2x32xf32>
    %101 = arith.mulf %99, %83 : vector<2x32xf32>
    %102 = arith.mulf %98, %97 : vector<2x32xf32>
    %103 = arith.addf %101, %102 : vector<2x32xf32>
    %104 = math.tanh %103 : vector<2x32xf32>
    %105 = arith.mulf %100, %104 : vector<2x32xf32>
    %c6 = arith.constant 6 : index
    %c0_39 = arith.constant 0 : index
    %106 = vector.load %arg18[%c6, %c0_39] : memref<16x32xf32, #tpu.memory_space<vmem>>, vector<2x32xf32>
    tpu.vector_store %arg18[%c6, %c0_39], %105 {strides = array<i32>} : memref<16x32xf32, #tpu.memory_space<vmem>>, vector<2x32xf32>,
    %107 = vector.extract_strided_slice %20 {offsets = [8, 0], sizes = [2, 128], strides = [1, 1]} : vector<16x128xf32> to vector<2x128xf32>
    %cst_40 = arith.constant dense<0.000000e+00> : vector<2x128xf32>
    %108 = tpu.matmul %105, %22, %cst_40 {dimension_numbers = #tpu.dot_dimension_numbers<[1], [0], [0], [1], [0, 0, 1, 1], [], []>} : vector<2x32xf32>, vector<32x128xf32>, vector<2x128xf32> -> vector<2x128xf32>
    %109 = arith.addf %107, %108 : vector<2x128xf32>
    %110 = vector.extract_strided_slice %109 {offsets = [0, 0], sizes = [2, 96], strides = [1, 1]} : vector<2x128xf32> to vector<2x96xf32>
    %111 = arith.negf %110 : vector<2x96xf32>
    %112 = math.exp %111 : vector<2x96xf32>
    %cst_41 = arith.constant 1.000000e+00 : f32
    %113 = vector.broadcast %cst_41 : f32 to vector<2x96xf32>
    %114 = arith.addf %113, %112 : vector<2x96xf32>
    %115 = arith.divf %113, %114 : vector<2x96xf32>
    %116 = vector.extract_strided_slice %109 {offsets = [0, 96], sizes = [2, 32], strides = [1, 1]} : vector<2x128xf32> to vector<2x32xf32>
    %117 = math.tanh %116 : vector<2x32xf32>
    %118 = vector.extract_strided_slice %115 {offsets = [0, 0], sizes = [2, 32], strides = [1, 1]} : vector<2x96xf32> to vector<2x32xf32>
    %119 = vector.extract_strided_slice %115 {offsets = [0, 32], sizes = [2, 32], strides = [1, 1]} : vector<2x96xf32> to vector<2x32xf32>
    %120 = vector.extract_strided_slice %115 {offsets = [0, 64], sizes = [2, 32], strides = [1, 1]} : vector<2x96xf32> to vector<2x32xf32>
    %121 = arith.mulf %119, %103 : vector<2x32xf32>
    %122 = arith.mulf %118, %117 : vector<2x32xf32>
    %123 = arith.addf %121, %122 : vector<2x32xf32>
    %124 = math.tanh %123 : vector<2x32xf32>
    %125 = arith.mulf %120, %124 : vector<2x32xf32>
    %c8 = arith.constant 8 : index
    %c0_42 = arith.constant 0 : index
    %126 = vector.load %arg18[%c8, %c0_42] : memref<16x32xf32, #tpu.memory_space<vmem>>, vector<2x32xf32>
    tpu.vector_store %arg18[%c8, %c0_42], %125 {strides = array<i32>} : memref<16x32xf32, #tpu.memory_space<vmem>>, vector<2x32xf32>,
    %127 = vector.extract_strided_slice %20 {offsets = [10, 0], sizes = [2, 128], strides = [1, 1]} : vector<16x128xf32> to vector<2x128xf32>
    %cst_43 = arith.constant dense<0.000000e+00> : vector<2x128xf32>
    %128 = tpu.matmul %125, %22, %cst_43 {dimension_numbers = #tpu.dot_dimension_numbers<[1], [0], [0], [1], [0, 0, 1, 1], [], []>} : vector<2x32xf32>, vector<32x128xf32>, vector<2x128xf32> -> vector<2x128xf32>
    %129 = arith.addf %127, %128 : vector<2x128xf32>
    %130 = vector.extract_strided_slice %129 {offsets = [0, 0], sizes = [2, 96], strides = [1, 1]} : vector<2x128xf32> to vector<2x96xf32>
    %131 = arith.negf %130 : vector<2x96xf32>
    %132 = math.exp %131 : vector<2x96xf32>
    %cst_44 = arith.constant 1.000000e+00 : f32
    %133 = vector.broadcast %cst_44 : f32 to vector<2x96xf32>
    %134 = arith.addf %133, %132 : vector<2x96xf32>
    %135 = arith.divf %133, %134 : vector<2x96xf32>
    %136 = vector.extract_strided_slice %129 {offsets = [0, 96], sizes = [2, 32], strides = [1, 1]} : vector<2x128xf32> to vector<2x32xf32>
    %137 = math.tanh %136 : vector<2x32xf32>
    %138 = vector.extract_strided_slice %135 {offsets = [0, 0], sizes = [2, 32], strides = [1, 1]} : vector<2x96xf32> to vector<2x32xf32>
    %139 = vector.extract_strided_slice %135 {offsets = [0, 32], sizes = [2, 32], strides = [1, 1]} : vector<2x96xf32> to vector<2x32xf32>
    %140 = vector.extract_strided_slice %135 {offsets = [0, 64], sizes = [2, 32], strides = [1, 1]} : vector<2x96xf32> to vector<2x32xf32>
    %141 = arith.mulf %139, %123 : vector<2x32xf32>
    %142 = arith.mulf %138, %137 : vector<2x32xf32>
    %143 = arith.addf %141, %142 : vector<2x32xf32>
    %144 = math.tanh %143 : vector<2x32xf32>
    %145 = arith.mulf %140, %144 : vector<2x32xf32>
    %c10 = arith.constant 10 : index
    %c0_45 = arith.constant 0 : index
    %146 = vector.load %arg18[%c10, %c0_45] : memref<16x32xf32, #tpu.memory_space<vmem>>, vector<2x32xf32>
    tpu.vector_store %arg18[%c10, %c0_45], %145 {strides = array<i32>} : memref<16x32xf32, #tpu.memory_space<vmem>>, vector<2x32xf32>,
    %147 = vector.extract_strided_slice %20 {offsets = [12, 0], sizes = [2, 128], strides = [1, 1]} : vector<16x128xf32> to vector<2x128xf32>
    %cst_46 = arith.constant dense<0.000000e+00> : vector<2x128xf32>
    %148 = tpu.matmul %145, %22, %cst_46 {dimension_numbers = #tpu.dot_dimension_numbers<[1], [0], [0], [1], [0, 0, 1, 1], [], []>} : vector<2x32xf32>, vector<32x128xf32>, vector<2x128xf32> -> vector<2x128xf32>
    %149 = arith.addf %147, %148 : vector<2x128xf32>
    %150 = vector.extract_strided_slice %149 {offsets = [0, 0], sizes = [2, 96], strides = [1, 1]} : vector<2x128xf32> to vector<2x96xf32>
    %151 = arith.negf %150 : vector<2x96xf32>
    %152 = math.exp %151 : vector<2x96xf32>
    %cst_47 = arith.constant 1.000000e+00 : f32
    %153 = vector.broadcast %cst_47 : f32 to vector<2x96xf32>
    %154 = arith.addf %153, %152 : vector<2x96xf32>
    %155 = arith.divf %153, %154 : vector<2x96xf32>
    %156 = vector.extract_strided_slice %149 {offsets = [0, 96], sizes = [2, 32], strides = [1, 1]} : vector<2x128xf32> to vector<2x32xf32>
    %157 = math.tanh %156 : vector<2x32xf32>
    %158 = vector.extract_strided_slice %155 {offsets = [0, 0], sizes = [2, 32], strides = [1, 1]} : vector<2x96xf32> to vector<2x32xf32>
    %159 = vector.extract_strided_slice %155 {offsets = [0, 32], sizes = [2, 32], strides = [1, 1]} : vector<2x96xf32> to vector<2x32xf32>
    %160 = vector.extract_strided_slice %155 {offsets = [0, 64], sizes = [2, 32], strides = [1, 1]} : vector<2x96xf32> to vector<2x32xf32>
    %161 = arith.mulf %159, %143 : vector<2x32xf32>
    %162 = arith.mulf %158, %157 : vector<2x32xf32>
    %163 = arith.addf %161, %162 : vector<2x32xf32>
    %164 = math.tanh %163 : vector<2x32xf32>
    %165 = arith.mulf %160, %164 : vector<2x32xf32>
    %c12 = arith.constant 12 : index
    %c0_48 = arith.constant 0 : index
    %166 = vector.load %arg18[%c12, %c0_48] : memref<16x32xf32, #tpu.memory_space<vmem>>, vector<2x32xf32>
    tpu.vector_store %arg18[%c12, %c0_48], %165 {strides = array<i32>} : memref<16x32xf32, #tpu.memory_space<vmem>>, vector<2x32xf32>,
    %167 = vector.extract_strided_slice %20 {offsets = [14, 0], sizes = [2, 128], strides = [1, 1]} : vector<16x128xf32> to vector<2x128xf32>
    %cst_49 = arith.constant dense<0.000000e+00> : vector<2x128xf32>
    %168 = tpu.matmul %165, %22, %cst_49 {dimension_numbers = #tpu.dot_dimension_numbers<[1], [0], [0], [1], [0, 0, 1, 1], [], []>} : vector<2x32xf32>, vector<32x128xf32>, vector<2x128xf32> -> vector<2x128xf32>
    %169 = arith.addf %167, %168 : vector<2x128xf32>
    %170 = vector.extract_strided_slice %169 {offsets = [0, 0], sizes = [2, 96], strides = [1, 1]} : vector<2x128xf32> to vector<2x96xf32>
    %171 = arith.negf %170 : vector<2x96xf32>
    %172 = math.exp %171 : vector<2x96xf32>
    %cst_50 = arith.constant 1.000000e+00 : f32
    %173 = vector.broadcast %cst_50 : f32 to vector<2x96xf32>
    %174 = arith.addf %173, %172 : vector<2x96xf32>
    %175 = arith.divf %173, %174 : vector<2x96xf32>
    %176 = vector.extract_strided_slice %169 {offsets = [0, 96], sizes = [2, 32], strides = [1, 1]} : vector<2x128xf32> to vector<2x32xf32>
    %177 = math.tanh %176 : vector<2x32xf32>
    %178 = vector.extract_strided_slice %175 {offsets = [0, 0], sizes = [2, 32], strides = [1, 1]} : vector<2x96xf32> to vector<2x32xf32>
    %179 = vector.extract_strided_slice %175 {offsets = [0, 32], sizes = [2, 32], strides = [1, 1]} : vector<2x96xf32> to vector<2x32xf32>
    %180 = vector.extract_strided_slice %175 {offsets = [0, 64], sizes = [2, 32], strides = [1, 1]} : vector<2x96xf32> to vector<2x32xf32>
    %181 = arith.mulf %179, %163 : vector<2x32xf32>
    %182 = arith.mulf %178, %177 : vector<2x32xf32>
    %183 = arith.addf %181, %182 : vector<2x32xf32>
    %184 = math.tanh %183 : vector<2x32xf32>
    %185 = arith.mulf %180, %184 : vector<2x32xf32>
    %c14 = arith.constant 14 : index
    %c0_51 = arith.constant 0 : index
    %186 = vector.load %arg18[%c14, %c0_51] : memref<16x32xf32, #tpu.memory_space<vmem>>, vector<2x32xf32>
    tpu.vector_store %arg18[%c14, %c0_51], %185 {strides = array<i32>} : memref<16x32xf32, #tpu.memory_space<vmem>>, vector<2x32xf32>,
    %c0_52 = arith.constant 0 : index
    %c0_53 = arith.constant 0 : index
    %c0_54 = arith.constant 0 : index
    %187 = vector.load %arg16[%c0_52, %c0_53, %c0_54] : memref<2x2x32xf32, #tpu.memory_space<vmem>>, vector<1x2x32xf32>
    %188 = vector.shape_cast %187 : vector<1x2x32xf32> to vector<2x32xf32>
    %189 = vector.shape_cast %185 : vector<2x32xf32> to vector<1x2x32xf32>
    tpu.vector_store %arg16[%c0_52, %c0_53, %c0_54], %189 {strides = array<i32>} : memref<2x2x32xf32, #tpu.memory_space<vmem>>, vector<1x2x32xf32>,
    %c0_55 = arith.constant 0 : index
    %c0_56 = arith.constant 0 : index
    %c0_57 = arith.constant 0 : index
    %190 = vector.load %arg17[%c0_55, %c0_56, %c0_57] : memref<2x2x32xf32, #tpu.memory_space<vmem>>, vector<1x2x32xf32>
    %191 = vector.shape_cast %190 : vector<1x2x32xf32> to vector<2x32xf32>
    %192 = vector.shape_cast %183 : vector<2x32xf32> to vector<1x2x32xf32>
    tpu.vector_store %arg17[%c0_55, %c0_56, %c0_57], %192 {strides = array<i32>} : memref<2x2x32xf32, #tpu.memory_space<vmem>>, vector<1x2x32xf32>,
    %c0_58 = arith.constant 0 : index
    %c0_59 = arith.constant 0 : index
    %193 = vector.load %arg18[%c0_58, %c0_59] : memref<16x32xf32, #tpu.memory_space<vmem>>, vector<16x32xf32>
    %c1 = arith.constant 1 : index
    %c0_60 = arith.constant 0 : index
    %c0_61 = arith.constant 0 : index
    %194 = vector.load %arg7[%c1, %c0_60, %c0_61] : memref<2x32x128xf32, #tpu.memory_space<vmem>>, vector<1x32x128xf32>
    %195 = vector.shape_cast %194 : vector<1x32x128xf32> to vector<32x128xf32>
    %cst_62 = arith.constant dense<0.000000e+00> : vector<16x128xf32>
    %196 = tpu.matmul %193, %195, %cst_62 {dimension_numbers = #tpu.dot_dimension_numbers<[1], [0], [0], [1], [0, 0, 1, 1], [], []>} : vector<16x32xf32>, vector<32x128xf32>, vector<16x128xf32> -> vector<16x128xf32>
    %c1_63 = arith.constant 1 : index
    %c0_64 = arith.constant 0 : index
    %c0_65 = arith.constant 0 : index
    %197 = vector.load %arg9[%c1_63, %c0_64, %c0_65] : memref<2x1x128xf32, #tpu.memory_space<vmem>>, vector<1x1x128xf32>
    %198 = vector.shape_cast %197 : vector<1x1x128xf32> to vector<1x128xf32>
    %199 = vector.broadcast %198 : vector<1x128xf32> to vector<16x128xf32>
    %200 = arith.addf %196, %199 : vector<16x128xf32>
    %c1_66 = arith.constant 1 : index
    %c0_67 = arith.constant 0 : index
    %c0_68 = arith.constant 0 : index
    %201 = vector.load %arg8[%c1_66, %c0_67, %c0_68] : memref<2x32x128xf32, #tpu.memory_space<vmem>>, vector<1x32x128xf32>
    %202 = vector.shape_cast %201 : vector<1x32x128xf32> to vector<32x128xf32>
    %c1_69 = arith.constant 1 : index
    %c0_70 = arith.constant 0 : index
    %c0_71 = arith.constant 0 : index
    %203 = vector.load %arg2[%c1_69, %c0_70, %c0_71] : memref<2x2x32xf32, #tpu.memory_space<vmem>>, vector<1x2x32xf32>
    %204 = vector.shape_cast %203 : vector<1x2x32xf32> to vector<2x32xf32>
    %c1_72 = arith.constant 1 : index
    %c0_73 = arith.constant 0 : index
    %c0_74 = arith.constant 0 : index
    %205 = vector.load %arg3[%c1_72, %c0_73, %c0_74] : memref<2x2x32xf32, #tpu.memory_space<vmem>>, vector<1x2x32xf32>
    %206 = vector.shape_cast %205 : vector<1x2x32xf32> to vector<2x32xf32>
    %207 = vector.extract_strided_slice %200 {offsets = [0, 0], sizes = [2, 128], strides = [1, 1]} : vector<16x128xf32> to vector<2x128xf32>
    %cst_75 = arith.constant dense<0.000000e+00> : vector<2x128xf32>
    %208 = tpu.matmul %204, %202, %cst_75 {dimension_numbers = #tpu.dot_dimension_numbers<[1], [0], [0], [1], [0, 0, 1, 1], [], []>} : vector<2x32xf32>, vector<32x128xf32>, vector<2x128xf32> -> vector<2x128xf32>
    %209 = arith.addf %207, %208 : vector<2x128xf32>
    %210 = vector.extract_strided_slice %209 {offsets = [0, 0], sizes = [2, 96], strides = [1, 1]} : vector<2x128xf32> to vector<2x96xf32>
    %211 = arith.negf %210 : vector<2x96xf32>
    %212 = math.exp %211 : vector<2x96xf32>
    %cst_76 = arith.constant 1.000000e+00 : f32
    %213 = vector.broadcast %cst_76 : f32 to vector<2x96xf32>
    %214 = arith.addf %213, %212 : vector<2x96xf32>
    %215 = arith.divf %213, %214 : vector<2x96xf32>
    %216 = vector.extract_strided_slice %209 {offsets = [0, 96], sizes = [2, 32], strides = [1, 1]} : vector<2x128xf32> to vector<2x32xf32>
    %217 = math.tanh %216 : vector<2x32xf32>
    %218 = vector.extract_strided_slice %215 {offsets = [0, 0], sizes = [2, 32], strides = [1, 1]} : vector<2x96xf32> to vector<2x32xf32>
    %219 = vector.extract_strided_slice %215 {offsets = [0, 32], sizes = [2, 32], strides = [1, 1]} : vector<2x96xf32> to vector<2x32xf32>
    %220 = vector.extract_strided_slice %215 {offsets = [0, 64], sizes = [2, 32], strides = [1, 1]} : vector<2x96xf32> to vector<2x32xf32>
    %221 = arith.mulf %219, %206 : vector<2x32xf32>
    %222 = arith.mulf %218, %217 : vector<2x32xf32>
    %223 = arith.addf %221, %222 : vector<2x32xf32>
    %224 = math.tanh %223 : vector<2x32xf32>
    %225 = arith.mulf %220, %224 : vector<2x32xf32>
    %c0_77 = arith.constant 0 : index
    %c0_78 = arith.constant 0 : index
    %226 = vector.load %arg18[%c0_77, %c0_78] : memref<16x32xf32, #tpu.memory_space<vmem>>, vector<2x32xf32>
    tpu.vector_store %arg18[%c0_77, %c0_78], %225 {strides = array<i32>} : memref<16x32xf32, #tpu.memory_space<vmem>>, vector<2x32xf32>,
    %227 = vector.extract_strided_slice %200 {offsets = [2, 0], sizes = [2, 128], strides = [1, 1]} : vector<16x128xf32> to vector<2x128xf32>
    %cst_79 = arith.constant dense<0.000000e+00> : vector<2x128xf32>
    %228 = tpu.matmul %225, %202, %cst_79 {dimension_numbers = #tpu.dot_dimension_numbers<[1], [0], [0], [1], [0, 0, 1, 1], [], []>} : vector<2x32xf32>, vector<32x128xf32>, vector<2x128xf32> -> vector<2x128xf32>
    %229 = arith.addf %227, %228 : vector<2x128xf32>
    %230 = vector.extract_strided_slice %229 {offsets = [0, 0], sizes = [2, 96], strides = [1, 1]} : vector<2x128xf32> to vector<2x96xf32>
    %231 = arith.negf %230 : vector<2x96xf32>
    %232 = math.exp %231 : vector<2x96xf32>
    %cst_80 = arith.constant 1.000000e+00 : f32
    %233 = vector.broadcast %cst_80 : f32 to vector<2x96xf32>
    %234 = arith.addf %233, %232 : vector<2x96xf32>
    %235 = arith.divf %233, %234 : vector<2x96xf32>
    %236 = vector.extract_strided_slice %229 {offsets = [0, 96], sizes = [2, 32], strides = [1, 1]} : vector<2x128xf32> to vector<2x32xf32>
    %237 = math.tanh %236 : vector<2x32xf32>
    %238 = vector.extract_strided_slice %235 {offsets = [0, 0], sizes = [2, 32], strides = [1, 1]} : vector<2x96xf32> to vector<2x32xf32>
    %239 = vector.extract_strided_slice %235 {offsets = [0, 32], sizes = [2, 32], strides = [1, 1]} : vector<2x96xf32> to vector<2x32xf32>
    %240 = vector.extract_strided_slice %235 {offsets = [0, 64], sizes = [2, 32], strides = [1, 1]} : vector<2x96xf32> to vector<2x32xf32>
    %241 = arith.mulf %239, %223 : vector<2x32xf32>
    %242 = arith.mulf %238, %237 : vector<2x32xf32>
    %243 = arith.addf %241, %242 : vector<2x32xf32>
    %244 = math.tanh %243 : vector<2x32xf32>
    %245 = arith.mulf %240, %244 : vector<2x32xf32>
    %c2_81 = arith.constant 2 : index
    %c0_82 = arith.constant 0 : index
    %246 = vector.load %arg18[%c2_81, %c0_82] : memref<16x32xf32, #tpu.memory_space<vmem>>, vector<2x32xf32>
    tpu.vector_store %arg18[%c2_81, %c0_82], %245 {strides = array<i32>} : memref<16x32xf32, #tpu.memory_space<vmem>>, vector<2x32xf32>,
    %247 = vector.extract_strided_slice %200 {offsets = [4, 0], sizes = [2, 128], strides = [1, 1]} : vector<16x128xf32> to vector<2x128xf32>
    %cst_83 = arith.constant dense<0.000000e+00> : vector<2x128xf32>
    %248 = tpu.matmul %245, %202, %cst_83 {dimension_numbers = #tpu.dot_dimension_numbers<[1], [0], [0], [1], [0, 0, 1, 1], [], []>} : vector<2x32xf32>, vector<32x128xf32>, vector<2x128xf32> -> vector<2x128xf32>
    %249 = arith.addf %247, %248 : vector<2x128xf32>
    %250 = vector.extract_strided_slice %249 {offsets = [0, 0], sizes = [2, 96], strides = [1, 1]} : vector<2x128xf32> to vector<2x96xf32>
    %251 = arith.negf %250 : vector<2x96xf32>
    %252 = math.exp %251 : vector<2x96xf32>
    %cst_84 = arith.constant 1.000000e+00 : f32
    %253 = vector.broadcast %cst_84 : f32 to vector<2x96xf32>
    %254 = arith.addf %253, %252 : vector<2x96xf32>
    %255 = arith.divf %253, %254 : vector<2x96xf32>
    %256 = vector.extract_strided_slice %249 {offsets = [0, 96], sizes = [2, 32], strides = [1, 1]} : vector<2x128xf32> to vector<2x32xf32>
    %257 = math.tanh %256 : vector<2x32xf32>
    %258 = vector.extract_strided_slice %255 {offsets = [0, 0], sizes = [2, 32], strides = [1, 1]} : vector<2x96xf32> to vector<2x32xf32>
    %259 = vector.extract_strided_slice %255 {offsets = [0, 32], sizes = [2, 32], strides = [1, 1]} : vector<2x96xf32> to vector<2x32xf32>
    %260 = vector.extract_strided_slice %255 {offsets = [0, 64], sizes = [2, 32], strides = [1, 1]} : vector<2x96xf32> to vector<2x32xf32>
    %261 = arith.mulf %259, %243 : vector<2x32xf32>
    %262 = arith.mulf %258, %257 : vector<2x32xf32>
    %263 = arith.addf %261, %262 : vector<2x32xf32>
    %264 = math.tanh %263 : vector<2x32xf32>
    %265 = arith.mulf %260, %264 : vector<2x32xf32>
    %c4_85 = arith.constant 4 : index
    %c0_86 = arith.constant 0 : index
    %266 = vector.load %arg18[%c4_85, %c0_86] : memref<16x32xf32, #tpu.memory_space<vmem>>, vector<2x32xf32>
    tpu.vector_store %arg18[%c4_85, %c0_86], %265 {strides = array<i32>} : memref<16x32xf32, #tpu.memory_space<vmem>>, vector<2x32xf32>,
    %267 = vector.extract_strided_slice %200 {offsets = [6, 0], sizes = [2, 128], strides = [1, 1]} : vector<16x128xf32> to vector<2x128xf32>
    %cst_87 = arith.constant dense<0.000000e+00> : vector<2x128xf32>
    %268 = tpu.matmul %265, %202, %cst_87 {dimension_numbers = #tpu.dot_dimension_numbers<[1], [0], [0], [1], [0, 0, 1, 1], [], []>} : vector<2x32xf32>, vector<32x128xf32>, vector<2x128xf32> -> vector<2x128xf32>
    %269 = arith.addf %267, %268 : vector<2x128xf32>
    %270 = vector.extract_strided_slice %269 {offsets = [0, 0], sizes = [2, 96], strides = [1, 1]} : vector<2x128xf32> to vector<2x96xf32>
    %271 = arith.negf %270 : vector<2x96xf32>
    %272 = math.exp %271 : vector<2x96xf32>
    %cst_88 = arith.constant 1.000000e+00 : f32
    %273 = vector.broadcast %cst_88 : f32 to vector<2x96xf32>
    %274 = arith.addf %273, %272 : vector<2x96xf32>
    %275 = arith.divf %273, %274 : vector<2x96xf32>
    %276 = vector.extract_strided_slice %269 {offsets = [0, 96], sizes = [2, 32], strides = [1, 1]} : vector<2x128xf32> to vector<2x32xf32>
    %277 = math.tanh %276 : vector<2x32xf32>
    %278 = vector.extract_strided_slice %275 {offsets = [0, 0], sizes = [2, 32], strides = [1, 1]} : vector<2x96xf32> to vector<2x32xf32>
    %279 = vector.extract_strided_slice %275 {offsets = [0, 32], sizes = [2, 32], strides = [1, 1]} : vector<2x96xf32> to vector<2x32xf32>
    %280 = vector.extract_strided_slice %275 {offsets = [0, 64], sizes = [2, 32], strides = [1, 1]} : vector<2x96xf32> to vector<2x32xf32>
    %281 = arith.mulf %279, %263 : vector<2x32xf32>
    %282 = arith.mulf %278, %277 : vector<2x32xf32>
    %283 = arith.addf %281, %282 : vector<2x32xf32>
    %284 = math.tanh %283 : vector<2x32xf32>
    %285 = arith.mulf %280, %284 : vector<2x32xf32>
    %c6_89 = arith.constant 6 : index
    %c0_90 = arith.constant 0 : index
    %286 = vector.load %arg18[%c6_89, %c0_90] : memref<16x32xf32, #tpu.memory_space<vmem>>, vector<2x32xf32>
    tpu.vector_store %arg18[%c6_89, %c0_90], %285 {strides = array<i32>} : memref<16x32xf32, #tpu.memory_space<vmem>>, vector<2x32xf32>,
    %287 = vector.extract_strided_slice %200 {offsets = [8, 0], sizes = [2, 128], strides = [1, 1]} : vector<16x128xf32> to vector<2x128xf32>
    %cst_91 = arith.constant dense<0.000000e+00> : vector<2x128xf32>
    %288 = tpu.matmul %285, %202, %cst_91 {dimension_numbers = #tpu.dot_dimension_numbers<[1], [0], [0], [1], [0, 0, 1, 1], [], []>} : vector<2x32xf32>, vector<32x128xf32>, vector<2x128xf32> -> vector<2x128xf32>
    %289 = arith.addf %287, %288 : vector<2x128xf32>
    %290 = vector.extract_strided_slice %289 {offsets = [0, 0], sizes = [2, 96], strides = [1, 1]} : vector<2x128xf32> to vector<2x96xf32>
    %291 = arith.negf %290 : vector<2x96xf32>
    %292 = math.exp %291 : vector<2x96xf32>
    %cst_92 = arith.constant 1.000000e+00 : f32
    %293 = vector.broadcast %cst_92 : f32 to vector<2x96xf32>
    %294 = arith.addf %293, %292 : vector<2x96xf32>
    %295 = arith.divf %293, %294 : vector<2x96xf32>
    %296 = vector.extract_strided_slice %289 {offsets = [0, 96], sizes = [2, 32], strides = [1, 1]} : vector<2x128xf32> to vector<2x32xf32>
    %297 = math.tanh %296 : vector<2x32xf32>
    %298 = vector.extract_strided_slice %295 {offsets = [0, 0], sizes = [2, 32], strides = [1, 1]} : vector<2x96xf32> to vector<2x32xf32>
    %299 = vector.extract_strided_slice %295 {offsets = [0, 32], sizes = [2, 32], strides = [1, 1]} : vector<2x96xf32> to vector<2x32xf32>
    %300 = vector.extract_strided_slice %295 {offsets = [0, 64], sizes = [2, 32], strides = [1, 1]} : vector<2x96xf32> to vector<2x32xf32>
    %301 = arith.mulf %299, %283 : vector<2x32xf32>
    %302 = arith.mulf %298, %297 : vector<2x32xf32>
    %303 = arith.addf %301, %302 : vector<2x32xf32>
    %304 = math.tanh %303 : vector<2x32xf32>
    %305 = arith.mulf %300, %304 : vector<2x32xf32>
    %c8_93 = arith.constant 8 : index
    %c0_94 = arith.constant 0 : index
    %306 = vector.load %arg18[%c8_93, %c0_94] : memref<16x32xf32, #tpu.memory_space<vmem>>, vector<2x32xf32>
    tpu.vector_store %arg18[%c8_93, %c0_94], %305 {strides = array<i32>} : memref<16x32xf32, #tpu.memory_space<vmem>>, vector<2x32xf32>,
    %307 = vector.extract_strided_slice %200 {offsets = [10, 0], sizes = [2, 128], strides = [1, 1]} : vector<16x128xf32> to vector<2x128xf32>
    %cst_95 = arith.constant dense<0.000000e+00> : vector<2x128xf32>
    %308 = tpu.matmul %305, %202, %cst_95 {dimension_numbers = #tpu.dot_dimension_numbers<[1], [0], [0], [1], [0, 0, 1, 1], [], []>} : vector<2x32xf32>, vector<32x128xf32>, vector<2x128xf32> -> vector<2x128xf32>
    %309 = arith.addf %307, %308 : vector<2x128xf32>
    %310 = vector.extract_strided_slice %309 {offsets = [0, 0], sizes = [2, 96], strides = [1, 1]} : vector<2x128xf32> to vector<2x96xf32>
    %311 = arith.negf %310 : vector<2x96xf32>
    %312 = math.exp %311 : vector<2x96xf32>
    %cst_96 = arith.constant 1.000000e+00 : f32
    %313 = vector.broadcast %cst_96 : f32 to vector<2x96xf32>
    %314 = arith.addf %313, %312 : vector<2x96xf32>
    %315 = arith.divf %313, %314 : vector<2x96xf32>
    %316 = vector.extract_strided_slice %309 {offsets = [0, 96], sizes = [2, 32], strides = [1, 1]} : vector<2x128xf32> to vector<2x32xf32>
    %317 = math.tanh %316 : vector<2x32xf32>
    %318 = vector.extract_strided_slice %315 {offsets = [0, 0], sizes = [2, 32], strides = [1, 1]} : vector<2x96xf32> to vector<2x32xf32>
    %319 = vector.extract_strided_slice %315 {offsets = [0, 32], sizes = [2, 32], strides = [1, 1]} : vector<2x96xf32> to vector<2x32xf32>
    %320 = vector.extract_strided_slice %315 {offsets = [0, 64], sizes = [2, 32], strides = [1, 1]} : vector<2x96xf32> to vector<2x32xf32>
    %321 = arith.mulf %319, %303 : vector<2x32xf32>
    %322 = arith.mulf %318, %317 : vector<2x32xf32>
    %323 = arith.addf %321, %322 : vector<2x32xf32>
    %324 = math.tanh %323 : vector<2x32xf32>
    %325 = arith.mulf %320, %324 : vector<2x32xf32>
    %c10_97 = arith.constant 10 : index
    %c0_98 = arith.constant 0 : index
    %326 = vector.load %arg18[%c10_97, %c0_98] : memref<16x32xf32, #tpu.memory_space<vmem>>, vector<2x32xf32>
    tpu.vector_store %arg18[%c10_97, %c0_98], %325 {strides = array<i32>} : memref<16x32xf32, #tpu.memory_space<vmem>>, vector<2x32xf32>,
    %327 = vector.extract_strided_slice %200 {offsets = [12, 0], sizes = [2, 128], strides = [1, 1]} : vector<16x128xf32> to vector<2x128xf32>
    %cst_99 = arith.constant dense<0.000000e+00> : vector<2x128xf32>
    %328 = tpu.matmul %325, %202, %cst_99 {dimension_numbers = #tpu.dot_dimension_numbers<[1], [0], [0], [1], [0, 0, 1, 1], [], []>} : vector<2x32xf32>, vector<32x128xf32>, vector<2x128xf32> -> vector<2x128xf32>
    %329 = arith.addf %327, %328 : vector<2x128xf32>
    %330 = vector.extract_strided_slice %329 {offsets = [0, 0], sizes = [2, 96], strides = [1, 1]} : vector<2x128xf32> to vector<2x96xf32>
    %331 = arith.negf %330 : vector<2x96xf32>
    %332 = math.exp %331 : vector<2x96xf32>
    %cst_100 = arith.constant 1.000000e+00 : f32
    %333 = vector.broadcast %cst_100 : f32 to vector<2x96xf32>
    %334 = arith.addf %333, %332 : vector<2x96xf32>
    %335 = arith.divf %333, %334 : vector<2x96xf32>
    %336 = vector.extract_strided_slice %329 {offsets = [0, 96], sizes = [2, 32], strides = [1, 1]} : vector<2x128xf32> to vector<2x32xf32>
    %337 = math.tanh %336 : vector<2x32xf32>
    %338 = vector.extract_strided_slice %335 {offsets = [0, 0], sizes = [2, 32], strides = [1, 1]} : vector<2x96xf32> to vector<2x32xf32>
    %339 = vector.extract_strided_slice %335 {offsets = [0, 32], sizes = [2, 32], strides = [1, 1]} : vector<2x96xf32> to vector<2x32xf32>
    %340 = vector.extract_strided_slice %335 {offsets = [0, 64], sizes = [2, 32], strides = [1, 1]} : vector<2x96xf32> to vector<2x32xf32>
    %341 = arith.mulf %339, %323 : vector<2x32xf32>
    %342 = arith.mulf %338, %337 : vector<2x32xf32>
    %343 = arith.addf %341, %342 : vector<2x32xf32>
    %344 = math.tanh %343 : vector<2x32xf32>
    %345 = arith.mulf %340, %344 : vector<2x32xf32>
    %c12_101 = arith.constant 12 : index
    %c0_102 = arith.constant 0 : index
    %346 = vector.load %arg18[%c12_101, %c0_102] : memref<16x32xf32, #tpu.memory_space<vmem>>, vector<2x32xf32>
    tpu.vector_store %arg18[%c12_101, %c0_102], %345 {strides = array<i32>} : memref<16x32xf32, #tpu.memory_space<vmem>>, vector<2x32xf32>,
    %347 = vector.extract_strided_slice %200 {offsets = [14, 0], sizes = [2, 128], strides = [1, 1]} : vector<16x128xf32> to vector<2x128xf32>
    %cst_103 = arith.constant dense<0.000000e+00> : vector<2x128xf32>
    %348 = tpu.matmul %345, %202, %cst_103 {dimension_numbers = #tpu.dot_dimension_numbers<[1], [0], [0], [1], [0, 0, 1, 1], [], []>} : vector<2x32xf32>, vector<32x128xf32>, vector<2x128xf32> -> vector<2x128xf32>
    %349 = arith.addf %347, %348 : vector<2x128xf32>
    %350 = vector.extract_strided_slice %349 {offsets = [0, 0], sizes = [2, 96], strides = [1, 1]} : vector<2x128xf32> to vector<2x96xf32>
    %351 = arith.negf %350 : vector<2x96xf32>
    %352 = math.exp %351 : vector<2x96xf32>
    %cst_104 = arith.constant 1.000000e+00 : f32
    %353 = vector.broadcast %cst_104 : f32 to vector<2x96xf32>
    %354 = arith.addf %353, %352 : vector<2x96xf32>
    %355 = arith.divf %353, %354 : vector<2x96xf32>
    %356 = vector.extract_strided_slice %349 {offsets = [0, 96], sizes = [2, 32], strides = [1, 1]} : vector<2x128xf32> to vector<2x32xf32>
    %357 = math.tanh %356 : vector<2x32xf32>
    %358 = vector.extract_strided_slice %355 {offsets = [0, 0], sizes = [2, 32], strides = [1, 1]} : vector<2x96xf32> to vector<2x32xf32>
    %359 = vector.extract_strided_slice %355 {offsets = [0, 32], sizes = [2, 32], strides = [1, 1]} : vector<2x96xf32> to vector<2x32xf32>
    %360 = vector.extract_strided_slice %355 {offsets = [0, 64], sizes = [2, 32], strides = [1, 1]} : vector<2x96xf32> to vector<2x32xf32>
    %361 = arith.mulf %359, %343 : vector<2x32xf32>
    %362 = arith.mulf %358, %357 : vector<2x32xf32>
    %363 = arith.addf %361, %362 : vector<2x32xf32>
    %364 = math.tanh %363 : vector<2x32xf32>
    %365 = arith.mulf %360, %364 : vector<2x32xf32>
    %c14_105 = arith.constant 14 : index
    %c0_106 = arith.constant 0 : index
    %366 = vector.load %arg18[%c14_105, %c0_106] : memref<16x32xf32, #tpu.memory_space<vmem>>, vector<2x32xf32>
    tpu.vector_store %arg18[%c14_105, %c0_106], %365 {strides = array<i32>} : memref<16x32xf32, #tpu.memory_space<vmem>>, vector<2x32xf32>,
    %c1_107 = arith.constant 1 : index
    %c0_108 = arith.constant 0 : index
    %c0_109 = arith.constant 0 : index
    %367 = vector.load %arg16[%c1_107, %c0_108, %c0_109] : memref<2x2x32xf32, #tpu.memory_space<vmem>>, vector<1x2x32xf32>
    %368 = vector.shape_cast %367 : vector<1x2x32xf32> to vector<2x32xf32>
    %369 = vector.shape_cast %365 : vector<2x32xf32> to vector<1x2x32xf32>
    tpu.vector_store %arg16[%c1_107, %c0_108, %c0_109], %369 {strides = array<i32>} : memref<2x2x32xf32, #tpu.memory_space<vmem>>, vector<1x2x32xf32>,
    %c1_110 = arith.constant 1 : index
    %c0_111 = arith.constant 0 : index
    %c0_112 = arith.constant 0 : index
    %370 = vector.load %arg17[%c1_110, %c0_111, %c0_112] : memref<2x2x32xf32, #tpu.memory_space<vmem>>, vector<1x2x32xf32>
    %371 = vector.shape_cast %370 : vector<1x2x32xf32> to vector<2x32xf32>
    %372 = vector.shape_cast %363 : vector<2x32xf32> to vector<1x2x32xf32>
    tpu.vector_store %arg17[%c1_110, %c0_111, %c0_112], %372 {strides = array<i32>} : memref<2x2x32xf32, #tpu.memory_space<vmem>>, vector<1x2x32xf32>,
    %c0_113 = arith.constant 0 : index
    %c0_114 = arith.constant 0 : index
    %373 = vector.load %arg18[%c0_113, %c0_114] : memref<16x32xf32, #tpu.memory_space<vmem>>, vector<16x32xf32>
    %c0_115 = arith.constant 0 : index
    %c0_116 = arith.constant 0 : index
    %374 = vector.load %arg10[%c0_115, %c0_116] : memref<32x32xf32, #tpu.memory_space<vmem>>, vector<32x32xf32>
    %cst_117 = arith.constant dense<0.000000e+00> : vector<16x32xf32>
    %375 = tpu.matmul %12, %374, %cst_117 {dimension_numbers = #tpu.dot_dimension_numbers<[1], [0], [0], [1], [0, 0, 1, 1], [], []>} : vector<16x32xf32>, vector<32x32xf32>, vector<16x32xf32> -> vector<16x32xf32>
    %c0_118 = arith.constant 0 : index
    %c0_119 = arith.constant 0 : index
    %376 = vector.load %arg11[%c0_118, %c0_119] : memref<32x32xf32, #tpu.memory_space<vmem>>, vector<32x32xf32>
    %cst_120 = arith.constant dense<0.000000e+00> : vector<16x32xf32>
    %377 = tpu.matmul %373, %376, %cst_120 {dimension_numbers = #tpu.dot_dimension_numbers<[1], [0], [0], [1], [0, 0, 1, 1], [], []>} : vector<16x32xf32>, vector<32x32xf32>, vector<16x32xf32> -> vector<16x32xf32>
    %378 = arith.addf %375, %377 : vector<16x32xf32>
    %c0_121 = arith.constant 0 : index
    %c0_122 = arith.constant 0 : index
    %379 = vector.load %arg12[%c0_121, %c0_122] : memref<1x32xf32, #tpu.memory_space<vmem>>, vector<1x32xf32>
    %380 = vector.broadcast %379 : vector<1x32xf32> to vector<16x32xf32>
    %381 = arith.addf %378, %380 : vector<16x32xf32>
    %cst_123 = arith.constant 0.000000e+00 : f32
    %382 = vector.broadcast %cst_123 : f32 to vector<16x32xf32>
    %383 = arith.maximumf %381, %382 : vector<16x32xf32>
    %c0_124 = arith.constant 0 : index
    %c0_125 = arith.constant 0 : index
    %384 = vector.load %arg13[%c0_124, %c0_125] : memref<32x4xf32, #tpu.memory_space<vmem>>, vector<32x4xf32>
    %cst_126 = arith.constant dense<0.000000e+00> : vector<16x4xf32>
    %385 = tpu.matmul %383, %384, %cst_126 {dimension_numbers = #tpu.dot_dimension_numbers<[1], [0], [0], [1], [0, 0, 1, 1], [], []>} : vector<16x32xf32>, vector<32x4xf32>, vector<16x4xf32> -> vector<16x4xf32>
    %c0_127 = arith.constant 0 : index
    %c0_128 = arith.constant 0 : index
    %386 = vector.load %arg14[%c0_127, %c0_128] : memref<1x4xf32, #tpu.memory_space<vmem>>, vector<1x4xf32>
    %387 = vector.broadcast %386 : vector<1x4xf32> to vector<16x4xf32>
    %388 = arith.addf %385, %387 : vector<16x4xf32>
    %389 = math.tanh %388 : vector<16x4xf32>
    %cst_129 = arith.constant 1.000000e+00 : f32
    %390 = vector.broadcast %cst_129 : f32 to vector<16x4xf32>
    %391 = arith.mulf %390, %389 : vector<16x4xf32>
    %c0_130 = arith.constant 0 : index
    %c0_131 = arith.constant 0 : index
    %392 = vector.load %arg15[%c0_130, %c0_131] : memref<16x4xf32, #tpu.memory_space<vmem>>, vector<16x4xf32>
    tpu.vector_store %arg15[%c0_130, %c0_131], %391 {strides = array<i32>} : memref<16x4xf32, #tpu.memory_space<vmem>>, vector<16x4xf32>,
    return
  }
}

</mosaic_0001>

<llo_original>
// kernel: actor_forward.1
$region0: #{actor_forward.1}
  #allocation0 [shape = 'u32[]', space=smem, size = 0x4, offset = 0x4, fixed_abs, tag = 'smem constant byte address 0x4 - core index']
  #allocation1 [shape = 'u32[72,128]{1,0:T(1,128)}', space=vmem, size = 0x9000, scoped, tag = 'internal scratch']
  #allocation2 [shape = 'f32[16,32]{1,0:T(8,128)}', space=vmem, size = 0x2000, scoped, tag = 'scratch operand']
  %s0 = inlined_call_operand.vmem [shape: f32[16,12], index: 0, kind: input, shape index: {}]
  %s1 = inlined_call_operand.vmem [shape: f32[16,4], index: 1, kind: input, shape index: {}]
  %s2 = inlined_call_operand.vmem [shape: f32[2,2,32], index: 2, kind: input, shape index: {}]
  %s3 = inlined_call_operand.vmem [shape: f32[2,2,32], index: 3, kind: input, shape index: {}]
  %s4 = inlined_call_operand.vmem [shape: f32[12,64], index: 4, kind: input, shape index: {}]
  %s5 = inlined_call_operand.vmem [shape: f32[4,64], index: 5, kind: input, shape index: {}]
  %s6 = inlined_call_operand.vmem [shape: f32[1,64], index: 6, kind: input, shape index: {}]
  %s7 = inlined_call_operand.vmem [shape: f32[2,32,128], index: 7, kind: input, shape index: {}]
  %s8 = inlined_call_operand.vmem [shape: f32[2,32,128], index: 8, kind: input, shape index: {}]
  %s9 = inlined_call_operand.vmem [shape: f32[2,1,128], index: 9, kind: input, shape index: {}]
  %s10 = inlined_call_operand.vmem [shape: f32[32,32], index: 10, kind: input, shape index: {}]
  %s11 = inlined_call_operand.vmem [shape: f32[32,32], index: 11, kind: input, shape index: {}]
  %s12 = inlined_call_operand.vmem [shape: f32[1,32], index: 12, kind: input, shape index: {}]
  %s13 = inlined_call_operand.vmem [shape: f32[32,4], index: 13, kind: input, shape index: {}]
  %s14 = inlined_call_operand.vmem [shape: f32[1,4], index: 14, kind: input, shape index: {}]
  %s15 = inlined_call_operand.vmem [shape: f32[16,4], index: 15, kind: output, shape index: {0}]
  %s16 = inlined_call_operand.hbm [shape: f32[2,2,32], index: 16, kind: output, shape index: {1}]
  %s17 = inlined_call_operand.hbm [shape: f32[2,2,32], index: 17, kind: output, shape index: {2}]
  %18 = xla_tuple %s15, %s16, %s17
  %s19 = sld [smem:[#allocation0]]
  $region86: #{actor_forward.1} parent=0
    _
  %s21 = ssub.s32 1, %s19
  %s22 = scalar_select 0, %s21, %s19
  $region1: #{actor_forward.1} parent=0
    #allocation3 [shape = 'u8[2048]{0}', space=vmem, size = 0x800, scoped, tag = 'output window, operand 1, single buffered']
    #allocation4 [shape = 's32[1]{0}', space=sflag, size = 0x4, scoped, tag = 'scoped memory for actor_forward.1']
    #allocation5 [shape = 'u8[2048]{0}', space=vmem, size = 0x800, scoped, tag = 'output window, operand 2, single buffered']
    #allocation6 [shape = 's32[1]{0}', space=sflag, size = 0x4, scoped, tag = 'scoped memory for actor_forward.1']
    %23 = vsyncpa [#allocation4], 0
    %24 = vsyncpa [#allocation6], 0
    // Predicated region
    $region2: #{actor_forward.1} parent=1 // pred_check
      _
    $region3: #{actor_forward.1} parent=1 // pred_check_branch
      %26 = sbr.rel (0) target = $region5
    $region4: #{actor_forward.1} parent=1 // pred_region
      _
    $region5: #{actor_forward.1} parent=1 // pred_fallthru
      _
    // Predicated region
    $region6: #{actor_forward.1} parent=1 // pred_check
      _
    $region7: #{actor_forward.1} parent=1 // pred_check_branch
      %28 = sbr.rel (0) target = $region9
    $region8: #{actor_forward.1} parent=1 // pred_region
      _
    $region9: #{actor_forward.1} parent=1 // pred_fallthru
      _
    // Predicated region
    $region10: #{actor_forward.1} parent=1 // pred_check
      _
    $region11: #{actor_forward.1} parent=1 // pred_check_branch
      %30 = sbr.rel (0) target = $region13
    $region12: #{actor_forward.1} parent=1 // pred_region
      _
    $region13: #{actor_forward.1} parent=1 // pred_fallthru
      _
    // Predicated region
    $region14: #{actor_forward.1} parent=1 // pred_check
      _
    $region15: #{actor_forward.1} parent=1 // pred_check_branch
      %32 = sbr.rel (0) target = $region17
    $region16: #{actor_forward.1} parent=1 // pred_region
      _
    $region17: #{actor_forward.1} parent=1 // pred_fallthru
      _
    // Predicated region
    $region18: #{actor_forward.1} parent=1 // pred_check
      _
    $region19: #{actor_forward.1} parent=1 // pred_check_branch
      %34 = sbr.rel (0) target = $region21
    $region20: #{actor_forward.1} parent=1 // pred_region
      _
    $region21: #{actor_forward.1} parent=1 // pred_fallthru
      _
    // Predicated region
    $region22: #{actor_forward.1} parent=1 // pred_check
      _
    $region23: #{actor_forward.1} parent=1 // pred_check_branch
      %36 = sbr.rel (0) target = $region25
    $region24: #{actor_forward.1} parent=1 // pred_region
      _
    $region25: #{actor_forward.1} parent=1 // pred_fallthru
      _
    // Predicated region
    $region26: #{actor_forward.1} parent=1 // pred_check
      _
    $region27: #{actor_forward.1} parent=1 // pred_check_branch
      %38 = sbr.rel (0) target = $region29
    $region28: #{actor_forward.1} parent=1 // pred_region
      _
    $region29: #{actor_forward.1} parent=1 // pred_fallthru
      _
    // Predicated region
    $region30: #{actor_forward.1} parent=1 // pred_check
      _
    $region31: #{actor_forward.1} parent=1 // pred_check_branch
      %40 = sbr.rel (0) target = $region33
    $region32: #{actor_forward.1} parent=1 // pred_region
      _
    $region33: #{actor_forward.1} parent=1 // pred_fallthru
      _
    // Predicated region
    $region34: #{actor_forward.1} parent=1 // pred_check
      _
    $region35: #{actor_forward.1} parent=1 // pred_check_branch
      %42 = sbr.rel (0) target = $region37
    $region36: #{actor_forward.1} parent=1 // pred_region
      _
    $region37: #{actor_forward.1} parent=1 // pred_fallthru
      _
    // Predicated region
    $region38: #{actor_forward.1} parent=1 // pred_check
      _
    $region39: #{actor_forward.1} parent=1 // pred_check_branch
      %44 = sbr.rel (0) target = $region41
    $region40: #{actor_forward.1} parent=1 // pred_region
      _
    $region41: #{actor_forward.1} parent=1 // pred_fallthru
      _
    // Predicated region
    $region42: #{actor_forward.1} parent=1 // pred_check
      _
    $region43: #{actor_forward.1} parent=1 // pred_check_branch
      %46 = sbr.rel (0) target = $region45
    $region44: #{actor_forward.1} parent=1 // pred_region
      _
    $region45: #{actor_forward.1} parent=1 // pred_fallthru
      _
    // Predicated region
    $region46: #{actor_forward.1} parent=1 // pred_check
      _
    $region47: #{actor_forward.1} parent=1 // pred_check_branch
      %48 = sbr.rel (0) target = $region49
    $region48: #{actor_forward.1} parent=1 // pred_region
      _
    $region49: #{actor_forward.1} parent=1 // pred_fallthru
      _
    // Predicated region
    $region50: #{actor_forward.1} parent=1 // pred_check
      _
    $region51: #{actor_forward.1} parent=1 // pred_check_branch
      %50 = sbr.rel (0) target = $region53
    $region52: #{actor_forward.1} parent=1 // pred_region
      _
    $region53: #{actor_forward.1} parent=1 // pred_fallthru
      _
    // Predicated region
    $region54: #{actor_forward.1} parent=1 // pred_check
      _
    $region55: #{actor_forward.1} parent=1 // pred_check_branch
      %52 = sbr.rel (0) target = $region57
    $region56: #{actor_forward.1} parent=1 // pred_region
      _
    $region57: #{actor_forward.1} parent=1 // pred_fallthru
      _
    // Predicated region
    $region58: #{actor_forward.1} parent=1 // pred_check
      _
    $region59: #{actor_forward.1} parent=1 // pred_check_branch
      %54 = sbr.rel (0) target = $region61
    $region60: #{actor_forward.1} parent=1 // pred_region
      _
    $region61: #{actor_forward.1} parent=1 // pred_fallthru
      _
    %v55 = vld [vmem:[%s0] sm:$0xff]
    %v56 = vld [vmem:[%s0 + $0x8] sm:$0xff]
    %v57 = vld [vmem:[%s1] sm:$0xff]
    %v58 = vld [vmem:[%s1 + $0x8] sm:$0xff]
    %v59 = vld [vmem:[%s4] sm:$0xff]
    %v60 = vld [vmem:[%s4 + $0x8] sm:$0xf]
    %v61 = vld [vmem:[%s5] sm:$0xf]
    %vm62 = vcmask 31744
    %v64 = vsel %vm62, %v57, 0
    %v67 = vsel %vm62, %v58, 0
    %vm69 = vcmask 1043456
    %v71 = vsel %vm69, %v61, 0
    %73 = vmatpush.msra.mxu0 0.0
    %74 = vmatpush.msra.mxu0 0.0
    %75 = vmatpush.msra.mxu0 0.0
    %76 = vmatpush.msra.mxu0 0.0
    %77 = vmatpush.msra.mxu0 0.0
    %78 = vmatpush.msra.mxu0 0.0
    %79 = vmatpush.msra.mxu0 0.0
    %80 = vmatpush.msra.mxu0 0.0
    %81 = vmatpush.msra.mxu0 0.0
    %82 = vmatpush.msra.mxu0 0.0
    %83 = vmatpush.msra.mxu0 0.0
    %84 = vmatpush.msra.mxu0 0.0
    %85 = vmatpush.msra.mxu0 0.0
    %86 = vmatpush.msra.mxu0 0.0
    %87 = vmatpush.msra.mxu0 0.0
    %88 = vmatpush.msra.mxu0 %v71
    %89 = vmatmul.f32.gmra.mxu0 %v64
    %v90 = vpop.f32.mrf.mxu0
    %v91 = vadd.f32 0.0, %v90
    %92 = vmatmul.f32.gmra.mxu0 %v67
    %v93 = vpop.f32.mrf.mxu0
    %v94 = vadd.f32 0.0, %v93
    %95 = vdwg.mxu0
    %vm96 = vcmask 97280
    %v98 = vsel %vm96, %v55, 0
    %v101 = vsel %vm96, %v56, 0
    %v104 = vsel %vm69, %v60, 0
    %106 = vmatpush.msra.mxu0 0.0
    %107 = vmatpush.msra.mxu0 0.0
    %108 = vmatpush.msra.mxu0 0.0
    %109 = vmatpush.msra.mxu0 0.0
    %110 = vmatpush.msra.mxu0 0.0
    %111 = vmatpush.msra.mxu0 0.0
    %112 = vmatpush.msra.mxu0 0.0
    %113 = vmatpush.msra.mxu0 0.0
    %114 = vmatpush.msra.mxu0 0.0
    %115 = vmatpush.msra.mxu0 0.0
    %116 = vmatpush.msra.mxu0 0.0
    %117 = vmatpush.msra.mxu0 0.0
    %118 = vmatpush.msra.mxu0 0.0
    %119 = vmatpush.msra.mxu0 0.0
    %120 = vmatpush.msra.mxu0 %v104
    %121 = vmatpush.msra.mxu0 %v59
    %122 = vmatmul.f32.gmra.mxu0 %v98
    %v123 = vpop.f32.mrf.mxu0
    %v124 = vadd.f32 %v91, %v123
    %125 = vmatmul.f32.gmra.mxu0 %v101
    %v126 = vpop.f32.mrf.mxu0
    %v127 = vadd.f32 %v94, %v126
    %128 = vdwg.mxu0
    %v129 = vld [vmem:[%s6] sm:$0x1]
    %v131 = vperm.slane %v129, 0
    %v133 = vadd.f32 %v124, %v131
    %v134 = vadd.f32 %v127, %v131
    %v135 = vmax.f32 %v133, 0.0
    %v136 = vmax.f32 %v134, 0.0
    %v137 = vld [vmem:[%s7] sm:$0xff]
    %v138 = vld [vmem:[%s7 + $0x8] sm:$0xff]
    %v139 = vld [vmem:[%s7 + $0x10] sm:$0xff]
    %v140 = vld [vmem:[%s7 + $0x18] sm:$0xff]
    %v141 = vld [vmem:[%s9] sm:$0x1]
    %v143 = vperm.slane %v141, 0
    %147 = vrot.lane.b32.xlu0 %v135, 96
    %v148 = vpop.permute.xlu0 %147
    %149 = vrot.lane.b32.xlu0 %v136, 96
    %v150 = vpop.permute.xlu0 %149
    %vm151 = vcmask 261120
    %v152 = vsel %vm151, %v148, 0
    %v154 = vsel %vm151, %v150, 0
    %156 = vmatpush.msra.mxu0 0.0
    %157 = vmatpush.msra.mxu0 0.0
    %158 = vmatpush.msra.mxu0 0.0
    %159 = vmatpush.msra.mxu0 0.0
    %160 = vmatpush.msra.mxu0 0.0
    %161 = vmatpush.msra.mxu0 0.0
    %162 = vmatpush.msra.mxu0 0.0
    %163 = vmatpush.msra.mxu0 0.0
    %164 = vmatpush.msra.mxu0 0.0
    %165 = vmatpush.msra.mxu0 0.0
    %166 = vmatpush.msra.mxu0 0.0
    %167 = vmatpush.msra.mxu0 0.0
    %168 = vmatpush.msra.mxu0 %v140
    %169 = vmatpush.msra.mxu0 %v139
    %170 = vmatpush.msra.mxu0 %v138
    %171 = vmatpush.msra.mxu0 %v137
    %172 = vmatmul.f32.gmra.mxu0 %v152
    %v173 = vpop.f32.mrf.mxu0
    %v174 = vadd.f32 %v143, %v173
    %175 = vmatmul.f32.gmra.mxu0 %v154
    %v176 = vpop.f32.mrf.mxu0
    %v177 = vadd.f32 %v143, %v176
    %178 = vdwg.mxu0
    %v179 = vld [vmem:[%s8] sm:$0xff]
    %v180 = vld [vmem:[%s8 + $0x8] sm:$0xff]
    %v181 = vld [vmem:[%s8 + $0x10] sm:$0xff]
    %v182 = vld [vmem:[%s8 + $0x18] sm:$0xff]
    %v183 = vld [vmem:[%s2] sm:$0x3]
    %v184 = vld [vmem:[%s3] sm:$0x3]
    %v186 = vsel %vm151, %v183, 0
    %188 = vmatpush.msra.mxu0 0.0
    %189 = vmatpush.msra.mxu0 0.0
    %190 = vmatpush.msra.mxu0 0.0
    %191 = vmatpush.msra.mxu0 0.0
    %192 = vmatpush.msra.mxu0 0.0
    %193 = vmatpush.msra.mxu0 0.0
    %194 = vmatpush.msra.mxu0 0.0
    %195 = vmatpush.msra.mxu0 0.0
    %196 = vmatpush.msra.mxu0 0.0
    %197 = vmatpush.msra.mxu0 0.0
    %198 = vmatpush.msra.mxu0 0.0
    %199 = vmatpush.msra.mxu0 0.0
    %200 = vmatpush.msra.mxu0 %v182
    %201 = vmatpush.msra.mxu0 %v181
    %202 = vmatpush.msra.mxu0 %v180
    %203 = vmatpush.msra.mxu0 %v179
    %204 = vmatmul.f32.gmra.mxu0 %v186
    %v205 = vpop.f32.mrf.mxu0
    %v206 = vadd.f32 0.0, %v205
    %207 = vdwg.mxu0
    %v208 = vadd.f32 %v174, %v206
    %v209 = vxor.u32 %v208, 2147483648
    %v210 = vmul.f32 %v209, 1.442695
    %v211 = vpow.pop %v210
    %v212 = vadd.f32 %v211, 1.0
    %v213 = vrcp.pop %v212
    %v214 = vmul.f32 %v212, %v213
    %v215 = vsub.f32 1.0, %v214
    %v216 = vmul.f32 %v213, %v215
    %v217 = vadd.f32 %v213, %v216
    %vm218 = vweird.f32 %v212
    %vm219 = vweird.f32 %v213
    %vm220 = vmor %vm218, %vm219
    %v221 = vsel %vm220, %v213, %v217
    %v222 = vand.u32 2147483647, %v212
    %vm223 = vcmp.eq.f32.partialorder %v222, 8.507059e+37
    %v224 = vand.u32 %v212, 2147483648
    %v225 = vor.u32 1.1754944e-38, %v224
    %v226 = vsel %vm223, %v225, %v221
    %v227 = vmul.f32 1.0, %v226
    %v228 = vtanh.pop %v208
    %230 = vrot.lane.b32.xlu0 %v184, 32
    %v231 = vpop.permute.xlu0 %230
    %v233 = vmul.f32 %v227, %v231
    %235 = vrot.lane.b32.xlu0 %v228, 32
    %v236 = vpop.permute.xlu0 %235
    %v238 = vmul.f32 %v227, %v236
    %240 = vrot.lane.b32.xlu0 %v238, 32
    %v241 = vpop.permute.xlu0 %240
    %v243 = vadd.f32 %v233, %v241
    %v244 = vtanh.pop %v243
    %246 = vrot.lane.b32.xlu0 %v244, 32
    %v247 = vpop.permute.xlu0 %246
    %v249 = vmul.f32 %v227, %v247
    %251 = vrot.lane.b32.xlu0 %v249, 64
    %v252 = vpop.permute.xlu0 %251
    %vm254 = vcmask 254976
    %255 = vst.msk [vmem:[#allocation2] sm:$0x3] %vm254, %v252
    %v256 = vsel %vm151, %v252, 0
    %258 = vmatpush.msra.mxu0 0.0
    %259 = vmatpush.msra.mxu0 0.0
    %260 = vmatpush.msra.mxu0 0.0
    %261 = vmatpush.msra.mxu0 0.0
    %262 = vmatpush.msra.mxu0 0.0
    %263 = vmatpush.msra.mxu0 0.0
    %264 = vmatpush.msra.mxu0 0.0
    %265 = vmatpush.msra.mxu0 0.0
    %266 = vmatpush.msra.mxu0 0.0
    %267 = vmatpush.msra.mxu0 0.0
    %268 = vmatpush.msra.mxu0 0.0
    %269 = vmatpush.msra.mxu0 0.0
    %270 = vmatpush.msra.mxu0 %v182
    %271 = vmatpush.msra.mxu0 %v181
    %272 = vmatpush.msra.mxu0 %v180
    %273 = vmatpush.msra.mxu0 %v179
    %274 = vmatmul.f32.gmra.mxu0 %v256
    %v275 = vpop.f32.mrf.mxu0
    %v276 = vadd.f32 0.0, %v275
    %277 = vdwg.mxu0
    %v279 = vrot.slane %v276, 6
    %v281 = vadd.f32 %v174, %v279
    %v282 = vxor.u32 %v281, 2147483648
    %v283 = vmul.f32 %v282, 1.442695
    %v284 = vpow.pop %v283
    %v285 = vadd.f32 %v284, 1.0
    %v286 = vrcp.pop %v285
    %v287 = vmul.f32 %v285, %v286
    %v288 = vsub.f32 1.0, %v287
    %v289 = vmul.f32 %v286, %v288
    %v290 = vadd.f32 %v286, %v289
    %vm291 = vweird.f32 %v285
    %vm292 = vweird.f32 %v286
    %vm293 = vmor %vm291, %vm292
    %v294 = vsel %vm293, %v286, %v290
    %v295 = vand.u32 2147483647, %v285
    %vm296 = vcmp.eq.f32.partialorder %v295, 8.507059e+37
    %v297 = vand.u32 %v285, 2147483648
    %v298 = vor.u32 1.1754944e-38, %v297
    %v299 = vsel %vm296, %v298, %v294
    %v300 = vmul.f32 1.0, %v299
    %v301 = vtanh.pop %v281
    %v303 = vrot.slane %v243, 6
    %v305 = vmul.f32 %v300, %v303
    %307 = vrot.lane.b32.xlu0 %v301, 32
    %v308 = vpop.permute.xlu0 %307
    %v310 = vmul.f32 %v300, %v308
    %312 = vrot.lane.b32.xlu0 %v310, 32
    %v313 = vpop.permute.xlu0 %312
    %v315 = vadd.f32 %v305, %v313
    %v316 = vtanh.pop %v315
    %318 = vrot.lane.b32.xlu0 %v316, 32
    %v319 = vpop.permute.xlu0 %318
    %v321 = vmul.f32 %v300, %v319
    %323 = vrot.lane.b32.xlu0 %v321, 64
    %v324 = vpop.permute.xlu0 %323
    %vm326 = vcmask 257026
    %327 = vst.msk [vmem:[#allocation2] sm:$0xc] %vm326, %v324
    %v328 = vrot.slane %v321, 2
    %329 = vrot.lane.b32.xlu0 %v328, 64
    %v330 = vpop.permute.xlu0 %329
    %v331 = vsel %vm151, %v330, 0
    %333 = vmatpush.msra.mxu0 0.0
    %334 = vmatpush.msra.mxu0 0.0
    %335 = vmatpush.msra.mxu0 0.0
    %336 = vmatpush.msra.mxu0 0.0
    %337 = vmatpush.msra.mxu0 0.0
    %338 = vmatpush.msra.mxu0 0.0
    %339 = vmatpush.msra.mxu0 0.0
    %340 = vmatpush.msra.mxu0 0.0
    %341 = vmatpush.msra.mxu0 0.0
    %342 = vmatpush.msra.mxu0 0.0
    %343 = vmatpush.msra.mxu0 0.0
    %344 = vmatpush.msra.mxu0 0.0
    %345 = vmatpush.msra.mxu0 %v182
    %346 = vmatpush.msra.mxu0 %v181
    %347 = vmatpush.msra.mxu0 %v180
    %348 = vmatpush.msra.mxu0 %v179
    %349 = vmatmul.f32.gmra.mxu0 %v331
    %v350 = vpop.f32.mrf.mxu0
    %v351 = vadd.f32 0.0, %v350
    %352 = vdwg.mxu0
    %v354 = vrot.slane %v351, 4
    %v356 = vadd.f32 %v174, %v354
    %v357 = vxor.u32 %v356, 2147483648
    %v358 = vmul.f32 %v357, 1.442695
    %v359 = vpow.pop %v358
    %v360 = vadd.f32 %v359, 1.0
    %v361 = vrcp.pop %v360
    %v362 = vmul.f32 %v360, %v361
    %v363 = vsub.f32 1.0, %v362
    %v364 = vmul.f32 %v361, %v363
    %v365 = vadd.f32 %v361, %v364
    %vm366 = vweird.f32 %v360
    %vm367 = vweird.f32 %v361
    %vm368 = vmor %vm366, %vm367
    %v369 = vsel %vm368, %v361, %v365
    %v370 = vand.u32 2147483647, %v360
    %vm371 = vcmp.eq.f32.partialorder %v370, 8.507059e+37
    %v372 = vand.u32 %v360, 2147483648
    %v373 = vor.u32 1.1754944e-38, %v372
    %v374 = vsel %vm371, %v373, %v369
    %v375 = vmul.f32 1.0, %v374
    %v376 = vtanh.pop %v356
    %v378 = vrot.slane %v315, 6
    %v380 = vmul.f32 %v375, %v378
    %382 = vrot.lane.b32.xlu0 %v376, 32
    %v383 = vpop.permute.xlu0 %382
    %v385 = vmul.f32 %v375, %v383
    %387 = vrot.lane.b32.xlu0 %v385, 32
    %v388 = vpop.permute.xlu0 %387
    %v390 = vadd.f32 %v380, %v388
    %v391 = vtanh.pop %v390
    %393 = vrot.lane.b32.xlu0 %v391, 32
    %v394 = vpop.permute.xlu0 %393
    %v396 = vmul.f32 %v375, %v394
    %398 = vrot.lane.b32.xlu0 %v396, 64
    %v399 = vpop.permute.xlu0 %398
    %vm401 = vcmask 259076
    %402 = vst.msk [vmem:[#allocation2] sm:$0x30] %vm401, %v399
    %v403 = vrot.slane %v396, 4
    %404 = vrot.lane.b32.xlu0 %v403, 64
    %v405 = vpop.permute.xlu0 %404
    %v406 = vsel %vm151, %v405, 0
    %408 = vmatpush.msra.mxu0 0.0
    %409 = vmatpush.msra.mxu0 0.0
    %410 = vmatpush.msra.mxu0 0.0
    %411 = vmatpush.msra.mxu0 0.0
    %412 = vmatpush.msra.mxu0 0.0
    %413 = vmatpush.msra.mxu0 0.0
    %414 = vmatpush.msra.mxu0 0.0
    %415 = vmatpush.msra.mxu0 0.0
    %416 = vmatpush.msra.mxu0 0.0
    %417 = vmatpush.msra.mxu0 0.0
    %418 = vmatpush.msra.mxu0 0.0
    %419 = vmatpush.msra.mxu0 0.0
    %420 = vmatpush.msra.mxu0 %v182
    %421 = vmatpush.msra.mxu0 %v181
    %422 = vmatpush.msra.mxu0 %v180
    %423 = vmatpush.msra.mxu0 %v179
    %424 = vmatmul.f32.gmra.mxu0 %v406
    %v425 = vpop.f32.mrf.mxu0
    %v426 = vadd.f32 0.0, %v425
    %427 = vdwg.mxu0
    %v429 = vrot.slane %v426, 2
    %v431 = vadd.f32 %v174, %v429
    %v432 = vxor.u32 %v431, 2147483648
    %v433 = vmul.f32 %v432, 1.442695
    %v434 = vpow.pop %v433
    %v435 = vadd.f32 %v434, 1.0
    %v436 = vrcp.pop %v435
    %v437 = vmul.f32 %v435, %v436
    %v438 = vsub.f32 1.0, %v437
    %v439 = vmul.f32 %v436, %v438
    %v440 = vadd.f32 %v436, %v439
    %vm441 = vweird.f32 %v435
    %vm442 = vweird.f32 %v436
    %vm443 = vmor %vm441, %vm442
    %v444 = vsel %vm443, %v436, %v440
    %v445 = vand.u32 2147483647, %v435
    %vm446 = vcmp.eq.f32.partialorder %v445, 8.507059e+37
    %v447 = vand.u32 %v435, 2147483648
    %v448 = vor.u32 1.1754944e-38, %v447
    %v449 = vsel %vm446, %v448, %v444
    %v450 = vmul.f32 1.0, %v449
    %v451 = vtanh.pop %v431
    %v453 = vrot.slane %v390, 6
    %v455 = vmul.f32 %v450, %v453
    %457 = vrot.lane.b32.xlu0 %v451, 32
    %v458 = vpop.permute.xlu0 %457
    %v460 = vmul.f32 %v450, %v458
    %462 = vrot.lane.b32.xlu0 %v460, 32
    %v463 = vpop.permute.xlu0 %462
    %v465 = vadd.f32 %v455, %v463
    %v466 = vtanh.pop %v465
    %468 = vrot.lane.b32.xlu0 %v466, 32
    %v469 = vpop.permute.xlu0 %468
    %v471 = vmul.f32 %v450, %v469
    %473 = vrot.lane.b32.xlu0 %v471, 64
    %v474 = vpop.permute.xlu0 %473
    %vm476 = vcmask 261126
    %477 = vst.msk [vmem:[#allocation2] sm:$0xc0] %vm476, %v474
    %v478 = vrot.slane %v471, 6
    %479 = vrot.lane.b32.xlu0 %v478, 64
    %v480 = vpop.permute.xlu0 %479
    %v481 = vsel %vm151, %v480, 0
    %483 = vmatpush.msra.mxu0 0.0
    %484 = vmatpush.msra.mxu0 0.0
    %485 = vmatpush.msra.mxu0 0.0
    %486 = vmatpush.msra.mxu0 0.0
    %487 = vmatpush.msra.mxu0 0.0
    %488 = vmatpush.msra.mxu0 0.0
    %489 = vmatpush.msra.mxu0 0.0
    %490 = vmatpush.msra.mxu0 0.0
    %491 = vmatpush.msra.mxu0 0.0
    %492 = vmatpush.msra.mxu0 0.0
    %493 = vmatpush.msra.mxu0 0.0
    %494 = vmatpush.msra.mxu0 0.0
    %495 = vmatpush.msra.mxu0 %v182
    %496 = vmatpush.msra.mxu0 %v181
    %497 = vmatpush.msra.mxu0 %v180
    %498 = vmatpush.msra.mxu0 %v179
    %499 = vmatmul.f32.gmra.mxu0 %v481
    %v500 = vpop.f32.mrf.mxu0
    %v501 = vadd.f32 0.0, %v500
    %502 = vdwg.mxu0
    %v503 = vadd.f32 %v177, %v501
    %v504 = vxor.u32 %v503, 2147483648
    %v505 = vmul.f32 %v504, 1.442695
    %v506 = vpow.pop %v505
    %v507 = vadd.f32 %v506, 1.0
    %v508 = vrcp.pop %v507
    %v509 = vmul.f32 %v507, %v508
    %v510 = vsub.f32 1.0, %v509
    %v511 = vmul.f32 %v508, %v510
    %v512 = vadd.f32 %v508, %v511
    %vm513 = vweird.f32 %v507
    %vm514 = vweird.f32 %v508
    %vm515 = vmor %vm513, %vm514
    %v516 = vsel %vm515, %v508, %v512
    %v517 = vand.u32 2147483647, %v507
    %vm518 = vcmp.eq.f32.partialorder %v517, 8.507059e+37
    %v519 = vand.u32 %v507, 2147483648
    %v520 = vor.u32 1.1754944e-38, %v519
    %v521 = vsel %vm518, %v520, %v516
    %v522 = vmul.f32 1.0, %v521
    %v523 = vtanh.pop %v503
    %v525 = vrot.slane %v465, 6
    %v527 = vmul.f32 %v522, %v525
    %529 = vrot.lane.b32.xlu0 %v523, 32
    %v530 = vpop.permute.xlu0 %529
    %v532 = vmul.f32 %v522, %v530
    %534 = vrot.lane.b32.xlu0 %v532, 32
    %v535 = vpop.permute.xlu0 %534
    %v537 = vadd.f32 %v527, %v535
    %v538 = vtanh.pop %v537
    %540 = vrot.lane.b32.xlu0 %v538, 32
    %v541 = vpop.permute.xlu0 %540
    %v543 = vmul.f32 %v522, %v541
    %545 = vrot.lane.b32.xlu0 %v543, 64
    %v546 = vpop.permute.xlu0 %545
    %548 = vst.msk [vmem:[#allocation2 + $0x8] sm:$0x3] %vm254, %v546
    %v549 = vsel %vm151, %v546, 0
    %551 = vmatpush.msra.mxu0 0.0
    %552 = vmatpush.msra.mxu0 0.0
    %553 = vmatpush.msra.mxu0 0.0
    %554 = vmatpush.msra.mxu0 0.0
    %555 = vmatpush.msra.mxu0 0.0
    %556 = vmatpush.msra.mxu0 0.0
    %557 = vmatpush.msra.mxu0 0.0
    %558 = vmatpush.msra.mxu0 0.0
    %559 = vmatpush.msra.mxu0 0.0
    %560 = vmatpush.msra.mxu0 0.0
    %561 = vmatpush.msra.mxu0 0.0
    %562 = vmatpush.msra.mxu0 0.0
    %563 = vmatpush.msra.mxu0 %v182
    %564 = vmatpush.msra.mxu0 %v181
    %565 = vmatpush.msra.mxu0 %v180
    %566 = vmatpush.msra.mxu0 %v179
    %567 = vmatmul.f32.gmra.mxu0 %v549
    %v568 = vpop.f32.mrf.mxu0
    %v569 = vadd.f32 0.0, %v568
    %570 = vdwg.mxu0
    %v572 = vrot.slane %v569, 6
    %v574 = vadd.f32 %v177, %v572
    %v575 = vxor.u32 %v574, 2147483648
    %v576 = vmul.f32 %v575, 1.442695
    %v577 = vpow.pop %v576
    %v578 = vadd.f32 %v577, 1.0
    %v579 = vrcp.pop %v578
    %v580 = vmul.f32 %v578, %v579
    %v581 = vsub.f32 1.0, %v580
    %v582 = vmul.f32 %v579, %v581
    %v583 = vadd.f32 %v579, %v582
    %vm584 = vweird.f32 %v578
    %vm585 = vweird.f32 %v579
    %vm586 = vmor %vm584, %vm585
    %v587 = vsel %vm586, %v579, %v583
    %v588 = vand.u32 2147483647, %v578
    %vm589 = vcmp.eq.f32.partialorder %v588, 8.507059e+37
    %v590 = vand.u32 %v578, 2147483648
    %v591 = vor.u32 1.1754944e-38, %v590
    %v592 = vsel %vm589, %v591, %v587
    %v593 = vmul.f32 1.0, %v592
    %v594 = vtanh.pop %v574
    %v596 = vrot.slane %v537, 6
    %v598 = vmul.f32 %v593, %v596
    %600 = vrot.lane.b32.xlu0 %v594, 32
    %v601 = vpop.permute.xlu0 %600
    %v603 = vmul.f32 %v593, %v601
    %605 = vrot.lane.b32.xlu0 %v603, 32
    %v606 = vpop.permute.xlu0 %605
    %v608 = vadd.f32 %v598, %v606
    %v609 = vtanh.pop %v608
    %611 = vrot.lane.b32.xlu0 %v609, 32
    %v612 = vpop.permute.xlu0 %611
    %v614 = vmul.f32 %v593, %v612
    %616 = vrot.lane.b32.xlu0 %v614, 64
    %v617 = vpop.permute.xlu0 %616
    %619 = vst.msk [vmem:[#allocation2 + $0x8] sm:$0xc] %vm326, %v617
    %v620 = vrot.slane %v614, 2
    %621 = vrot.lane.b32.xlu0 %v620, 64
    %v622 = vpop.permute.xlu0 %621
    %v623 = vsel %vm151, %v622, 0
    %625 = vmatpush.msra.mxu0 0.0
    %626 = vmatpush.msra.mxu0 0.0
    %627 = vmatpush.msra.mxu0 0.0
    %628 = vmatpush.msra.mxu0 0.0
    %629 = vmatpush.msra.mxu0 0.0
    %630 = vmatpush.msra.mxu0 0.0
    %631 = vmatpush.msra.mxu0 0.0
    %632 = vmatpush.msra.mxu0 0.0
    %633 = vmatpush.msra.mxu0 0.0
    %634 = vmatpush.msra.mxu0 0.0
    %635 = vmatpush.msra.mxu0 0.0
    %636 = vmatpush.msra.mxu0 0.0
    %637 = vmatpush.msra.mxu0 %v182
    %638 = vmatpush.msra.mxu0 %v181
    %639 = vmatpush.msra.mxu0 %v180
    %640 = vmatpush.msra.mxu0 %v179
    %641 = vmatmul.f32.gmra.mxu0 %v623
    %v642 = vpop.f32.mrf.mxu0
    %v643 = vadd.f32 0.0, %v642
    %644 = vdwg.mxu0
    %v646 = vrot.slane %v643, 4
    %v648 = vadd.f32 %v177, %v646
    %v649 = vxor.u32 %v648, 2147483648
    %v650 = vmul.f32 %v649, 1.442695
    %v651 = vpow.pop %v650
    %v652 = vadd.f32 %v651, 1.0
    %v653 = vrcp.pop %v652
    %v654 = vmul.f32 %v652, %v653
    %v655 = vsub.f32 1.0, %v654
    %v656 = vmul.f32 %v653, %v655
    %v657 = vadd.f32 %v653, %v656
    %vm658 = vweird.f32 %v652
    %vm659 = vweird.f32 %v653
    %vm660 = vmor %vm658, %vm659
    %v661 = vsel %vm660, %v653, %v657
    %v662 = vand.u32 2147483647, %v652
    %vm663 = vcmp.eq.f32.partialorder %v662, 8.507059e+37
    %v664 = vand.u32 %v652, 2147483648
    %v665 = vor.u32 1.1754944e-38, %v664
    %v666 = vsel %vm663, %v665, %v661
    %v667 = vmul.f32 1.0, %v666
    %v668 = vtanh.pop %v648
    %v670 = vrot.slane %v608, 6
    %v672 = vmul.f32 %v667, %v670
    %674 = vrot.lane.b32.xlu0 %v668, 32
    %v675 = vpop.permute.xlu0 %674
    %v677 = vmul.f32 %v667, %v675
    %679 = vrot.lane.b32.xlu0 %v677, 32
    %v680 = vpop.permute.xlu0 %679
    %v682 = vadd.f32 %v672, %v680
    %v683 = vtanh.pop %v682
    %685 = vrot.lane.b32.xlu0 %v683, 32
    %v686 = vpop.permute.xlu0 %685
    %v688 = vmul.f32 %v667, %v686
    %690 = vrot.lane.b32.xlu0 %v688, 64
    %v691 = vpop.permute.xlu0 %690
    %693 = vst.msk [vmem:[#allocation2 + $0x8] sm:$0x30] %vm401, %v691
    %v694 = vrot.slane %v688, 4
    %695 = vrot.lane.b32.xlu0 %v694, 64
    %v696 = vpop.permute.xlu0 %695
    %v697 = vsel %vm151, %v696, 0
    %699 = vmatpush.msra.mxu0 0.0
    %700 = vmatpush.msra.mxu0 0.0
    %701 = vmatpush.msra.mxu0 0.0
    %702 = vmatpush.msra.mxu0 0.0
    %703 = vmatpush.msra.mxu0 0.0
    %704 = vmatpush.msra.mxu0 0.0
    %705 = vmatpush.msra.mxu0 0.0
    %706 = vmatpush.msra.mxu0 0.0
    %707 = vmatpush.msra.mxu0 0.0
    %708 = vmatpush.msra.mxu0 0.0
    %709 = vmatpush.msra.mxu0 0.0
    %710 = vmatpush.msra.mxu0 0.0
    %711 = vmatpush.msra.mxu0 %v182
    %712 = vmatpush.msra.mxu0 %v181
    %713 = vmatpush.msra.mxu0 %v180
    %714 = vmatpush.msra.mxu0 %v179
    %715 = vmatmul.f32.gmra.mxu0 %v697
    %v716 = vpop.f32.mrf.mxu0
    %v717 = vadd.f32 0.0, %v716
    %718 = vdwg.mxu0
    %v720 = vrot.slane %v717, 2
    %v722 = vadd.f32 %v177, %v720
    %v723 = vxor.u32 %v722, 2147483648
    %v724 = vmul.f32 %v723, 1.442695
    %v725 = vpow.pop %v724
    %v726 = vadd.f32 %v725, 1.0
    %v727 = vrcp.pop %v726
    %v728 = vmul.f32 %v726, %v727
    %v729 = vsub.f32 1.0, %v728
    %v730 = vmul.f32 %v727, %v729
    %v731 = vadd.f32 %v727, %v730
    %vm732 = vweird.f32 %v726
    %vm733 = vweird.f32 %v727
    %vm734 = vmor %vm732, %vm733
    %v735 = vsel %vm734, %v727, %v731
    %v736 = vand.u32 2147483647, %v726
    %vm737 = vcmp.eq.f32.partialorder %v736, 8.507059e+37
    %v738 = vand.u32 %v726, 2147483648
    %v739 = vor.u32 1.1754944e-38, %v738
    %v740 = vsel %vm737, %v739, %v735
    %v741 = vmul.f32 1.0, %v740
    %v742 = vtanh.pop %v722
    %v744 = vrot.slane %v682, 6
    %v746 = vmul.f32 %v741, %v744
    %748 = vrot.lane.b32.xlu0 %v742, 32
    %v749 = vpop.permute.xlu0 %748
    %v751 = vmul.f32 %v741, %v749
    %753 = vrot.lane.b32.xlu0 %v751, 32
    %v754 = vpop.permute.xlu0 %753
    %v756 = vadd.f32 %v746, %v754
    %v757 = vtanh.pop %v756
    %759 = vrot.lane.b32.xlu0 %v757, 32
    %v760 = vpop.permute.xlu0 %759
    %v762 = vmul.f32 %v741, %v760
    %764 = vrot.lane.b32.xlu0 %v762, 64
    %v765 = vpop.permute.xlu0 %764
    %767 = vst.msk [vmem:[#allocation2 + $0x8] sm:$0xc0] %vm476, %v765
    %768 = vst.msk [vmem:[#allocation3 - $0x6] sm:$0xc0] %vm476, %v765
    %770 = vrot.lane.b32.xlu0 %v756, 96
    %v771 = vpop.permute.xlu0 %770
    %773 = vst.msk [vmem:[#allocation5 - $0x6] sm:$0xc0] %vm476, %v771
    %v774 = vld [vmem:[#allocation2] sm:$0xff]
    %v775 = vld [vmem:[#allocation2 + $0x8] sm:$0xff]
    %s776 = scalar_lea.vmem %s7, 32
    %v777 = vld [vmem:[%s776] sm:$0xff]
    %v778 = vld [vmem:[%s776 + $0x8] sm:$0xff]
    %v779 = vld [vmem:[%s776 + $0x10] sm:$0xff]
    %v780 = vld [vmem:[%s776 + $0x18] sm:$0xff]
    %s781 = scalar_lea.vmem %s9, 1
    %v782 = vld [vmem:[%s781] sm:$0x1]
    %v784 = vperm.slane %v782, 0
    %v787 = vsel %vm151, %v774, 0
    %v790 = vsel %vm151, %v775, 0
    %792 = vmatpush.msra.mxu0 0.0
    %793 = vmatpush.msra.mxu0 0.0
    %794 = vmatpush.msra.mxu0 0.0
    %795 = vmatpush.msra.mxu0 0.0
    %796 = vmatpush.msra.mxu0 0.0
    %797 = vmatpush.msra.mxu0 0.0
    %798 = vmatpush.msra.mxu0 0.0
    %799 = vmatpush.msra.mxu0 0.0
    %800 = vmatpush.msra.mxu0 0.0
    %801 = vmatpush.msra.mxu0 0.0
    %802 = vmatpush.msra.mxu0 0.0
    %803 = vmatpush.msra.mxu0 0.0
    %804 = vmatpush.msra.mxu0 %v780
    %805 = vmatpush.msra.mxu0 %v779
    %806 = vmatpush.msra.mxu0 %v778
    %807 = vmatpush.msra.mxu0 %v777
    %808 = vmatmul.f32.gmra.mxu0 %v787
    %v809 = vpop.f32.mrf.mxu0
    %v810 = vadd.f32 %v784, %v809
    %811 = vmatmul.f32.gmra.mxu0 %v790
    %v812 = vpop.f32.mrf.mxu0
    %v813 = vadd.f32 %v784, %v812
    %814 = vdwg.mxu0
    %s815 = scalar_lea.vmem %s8, 32
    %v816 = vld [vmem:[%s815] sm:$0xff]
    %v817 = vld [vmem:[%s815 + $0x8] sm:$0xff]
    %v818 = vld [vmem:[%s815 + $0x10] sm:$0xff]
    %v819 = vld [vmem:[%s815 + $0x18] sm:$0xff]
    %s820 = scalar_lea.vmem %s2, 2
    %v821 = vld [vmem:[%s820] sm:$0x3]
    %s822 = scalar_lea.vmem %s3, 2
    %v823 = vld [vmem:[%s822] sm:$0x3]
    %v825 = vsel %vm151, %v821, 0
    %827 = vmatpush.msra.mxu0 0.0
    %828 = vmatpush.msra.mxu0 0.0
    %829 = vmatpush.msra.mxu0 0.0
    %830 = vmatpush.msra.mxu0 0.0
    %831 = vmatpush.msra.mxu0 0.0
    %832 = vmatpush.msra.mxu0 0.0
    %833 = vmatpush.msra.mxu0 0.0
    %834 = vmatpush.msra.mxu0 0.0
    %835 = vmatpush.msra.mxu0 0.0
    %836 = vmatpush.msra.mxu0 0.0
    %837 = vmatpush.msra.mxu0 0.0
    %838 = vmatpush.msra.mxu0 0.0
    %839 = vmatpush.msra.mxu0 %v819
    %840 = vmatpush.msra.mxu0 %v818
    %841 = vmatpush.msra.mxu0 %v817
    %842 = vmatpush.msra.mxu0 %v816
    %843 = vmatmul.f32.gmra.mxu0 %v825
    %v844 = vpop.f32.mrf.mxu0
    %v845 = vadd.f32 0.0, %v844
    %846 = vdwg.mxu0
    %v847 = vadd.f32 %v810, %v845
    %v848 = vxor.u32 %v847, 2147483648
    %v849 = vmul.f32 %v848, 1.442695
    %v850 = vpow.pop %v849
    %v851 = vadd.f32 %v850, 1.0
    %v852 = vrcp.pop %v851
    %v853 = vmul.f32 %v851, %v852
    %v854 = vsub.f32 1.0, %v853
    %v855 = vmul.f32 %v852, %v854
    %v856 = vadd.f32 %v852, %v855
    %vm857 = vweird.f32 %v851
    %vm858 = vweird.f32 %v852
    %vm859 = vmor %vm857, %vm858
    %v860 = vsel %vm859, %v852, %v856
    %v861 = vand.u32 2147483647, %v851
    %vm862 = vcmp.eq.f32.partialorder %v861, 8.507059e+37
    %v863 = vand.u32 %v851, 2147483648
    %v864 = vor.u32 1.1754944e-38, %v863
    %v865 = vsel %vm862, %v864, %v860
    %v866 = vmul.f32 1.0, %v865
    %v867 = vtanh.pop %v847
    %869 = vrot.lane.b32.xlu0 %v823, 32
    %v870 = vpop.permute.xlu0 %869
    %v872 = vmul.f32 %v866, %v870
    %874 = vrot.lane.b32.xlu0 %v867, 32
    %v875 = vpop.permute.xlu0 %874
    %v877 = vmul.f32 %v866, %v875
    %879 = vrot.lane.b32.xlu0 %v877, 32
    %v880 = vpop.permute.xlu0 %879
    %v882 = vadd.f32 %v872, %v880
    %v883 = vtanh.pop %v882
    %885 = vrot.lane.b32.xlu0 %v883, 32
    %v886 = vpop.permute.xlu0 %885
    %v888 = vmul.f32 %v866, %v886
    %890 = vrot.lane.b32.xlu0 %v888, 64
    %v891 = vpop.permute.xlu0 %890
    %893 = vst.msk [vmem:[#allocation2] sm:$0x3] %vm254, %v891
    %v894 = vsel %vm151, %v891, 0
    %896 = vmatpush.msra.mxu0 0.0
    %897 = vmatpush.msra.mxu0 0.0
    %898 = vmatpush.msra.mxu0 0.0
    %899 = vmatpush.msra.mxu0 0.0
    %900 = vmatpush.msra.mxu0 0.0
    %901 = vmatpush.msra.mxu0 0.0
    %902 = vmatpush.msra.mxu0 0.0
    %903 = vmatpush.msra.mxu0 0.0
    %904 = vmatpush.msra.mxu0 0.0
    %905 = vmatpush.msra.mxu0 0.0
    %906 = vmatpush.msra.mxu0 0.0
    %907 = vmatpush.msra.mxu0 0.0
    %908 = vmatpush.msra.mxu0 %v819
    %909 = vmatpush.msra.mxu0 %v818
    %910 = vmatpush.msra.mxu0 %v817
    %911 = vmatpush.msra.mxu0 %v816
    %912 = vmatmul.f32.gmra.mxu0 %v894
    %v913 = vpop.f32.mrf.mxu0
    %v914 = vadd.f32 0.0, %v913
    %915 = vdwg.mxu0
    %v917 = vrot.slane %v914, 6
    %v919 = vadd.f32 %v810, %v917
    %v920 = vxor.u32 %v919, 2147483648
    %v921 = vmul.f32 %v920, 1.442695
    %v922 = vpow.pop %v921
    %v923 = vadd.f32 %v922, 1.0
    %v924 = vrcp.pop %v923
    %v925 = vmul.f32 %v923, %v924
    %v926 = vsub.f32 1.0, %v925
    %v927 = vmul.f32 %v924, %v926
    %v928 = vadd.f32 %v924, %v927
    %vm929 = vweird.f32 %v923
    %vm930 = vweird.f32 %v924
    %vm931 = vmor %vm929, %vm930
    %v932 = vsel %vm931, %v924, %v928
    %v933 = vand.u32 2147483647, %v923
    %vm934 = vcmp.eq.f32.partialorder %v933, 8.507059e+37
    %v935 = vand.u32 %v923, 2147483648
    %v936 = vor.u32 1.1754944e-38, %v935
    %v937 = vsel %vm934, %v936, %v932
    %v938 = vmul.f32 1.0, %v937
    %v939 = vtanh.pop %v919
    %v941 = vrot.slane %v882, 6
    %v943 = vmul.f32 %v938, %v941
    %945 = vrot.lane.b32.xlu0 %v939, 32
    %v946 = vpop.permute.xlu0 %945
    %v948 = vmul.f32 %v938, %v946
    %950 = vrot.lane.b32.xlu0 %v948, 32
    %v951 = vpop.permute.xlu0 %950
    %v953 = vadd.f32 %v943, %v951
    %v954 = vtanh.pop %v953
    %956 = vrot.lane.b32.xlu0 %v954, 32
    %v957 = vpop.permute.xlu0 %956
    %v959 = vmul.f32 %v938, %v957
    %961 = vrot.lane.b32.xlu0 %v959, 64
    %v962 = vpop.permute.xlu0 %961
    %964 = vst.msk [vmem:[#allocation2] sm:$0xc] %vm326, %v962
    %v965 = vrot.slane %v959, 2
    %966 = vrot.lane.b32.xlu0 %v965, 64
    %v967 = vpop.permute.xlu0 %966
    %v968 = vsel %vm151, %v967, 0
    %970 = vmatpush.msra.mxu0 0.0
    %971 = vmatpush.msra.mxu0 0.0
    %972 = vmatpush.msra.mxu0 0.0
    %973 = vmatpush.msra.mxu0 0.0
    %974 = vmatpush.msra.mxu0 0.0
    %975 = vmatpush.msra.mxu0 0.0
    %976 = vmatpush.msra.mxu0 0.0
    %977 = vmatpush.msra.mxu0 0.0
    %978 = vmatpush.msra.mxu0 0.0
    %979 = vmatpush.msra.mxu0 0.0
    %980 = vmatpush.msra.mxu0 0.0
    %981 = vmatpush.msra.mxu0 0.0
    %982 = vmatpush.msra.mxu0 %v819
    %983 = vmatpush.msra.mxu0 %v818
    %984 = vmatpush.msra.mxu0 %v817
    %985 = vmatpush.msra.mxu0 %v816
    %986 = vmatmul.f32.gmra.mxu0 %v968
    %v987 = vpop.f32.mrf.mxu0
    %v988 = vadd.f32 0.0, %v987
    %989 = vdwg.mxu0
    %v991 = vrot.slane %v988, 4
    %v993 = vadd.f32 %v810, %v991
    %v994 = vxor.u32 %v993, 2147483648
    %v995 = vmul.f32 %v994, 1.442695
    %v996 = vpow.pop %v995
    %v997 = vadd.f32 %v996, 1.0
    %v998 = vrcp.pop %v997
    %v999 = vmul.f32 %v997, %v998
    %v1000 = vsub.f32 1.0, %v999
    %v1001 = vmul.f32 %v998, %v1000
    %v1002 = vadd.f32 %v998, %v1001
    %vm1003 = vweird.f32 %v997
    %vm1004 = vweird.f32 %v998
    %vm1005 = vmor %vm1003, %vm1004
    %v1006 = vsel %vm1005, %v998, %v1002
    %v1007 = vand.u32 2147483647, %v997
    %vm1008 = vcmp.eq.f32.partialorder %v1007, 8.507059e+37
    %v1009 = vand.u32 %v997, 2147483648
    %v1010 = vor.u32 1.1754944e-38, %v1009
    %v1011 = vsel %vm1008, %v1010, %v1006
    %v1012 = vmul.f32 1.0, %v1011
    %v1013 = vtanh.pop %v993
    %v1015 = vrot.slane %v953, 6
    %v1017 = vmul.f32 %v1012, %v1015
    %1019 = vrot.lane.b32.xlu0 %v1013, 32
    %v1020 = vpop.permute.xlu0 %1019
    %v1022 = vmul.f32 %v1012, %v1020
    %1024 = vrot.lane.b32.xlu0 %v1022, 32
    %v1025 = vpop.permute.xlu0 %1024
    %v1027 = vadd.f32 %v1017, %v1025
    %v1028 = vtanh.pop %v1027
    %1030 = vrot.lane.b32.xlu0 %v1028, 32
    %v1031 = vpop.permute.xlu0 %1030
    %v1033 = vmul.f32 %v1012, %v1031
    %1035 = vrot.lane.b32.xlu0 %v1033, 64
    %v1036 = vpop.permute.xlu0 %1035
    %1038 = vst.msk [vmem:[#allocation2] sm:$0x30] %vm401, %v1036
    %v1039 = vrot.slane %v1033, 4
    %1040 = vrot.lane.b32.xlu0 %v1039, 64
    %v1041 = vpop.permute.xlu0 %1040
    %v1042 = vsel %vm151, %v1041, 0
    %1044 = vmatpush.msra.mxu0 0.0
    %1045 = vmatpush.msra.mxu0 0.0
    %1046 = vmatpush.msra.mxu0 0.0
    %1047 = vmatpush.msra.mxu0 0.0
    %1048 = vmatpush.msra.mxu0 0.0
    %1049 = vmatpush.msra.mxu0 0.0
    %1050 = vmatpush.msra.mxu0 0.0
    %1051 = vmatpush.msra.mxu0 0.0
    %1052 = vmatpush.msra.mxu0 0.0
    %1053 = vmatpush.msra.mxu0 0.0
    %1054 = vmatpush.msra.mxu0 0.0
    %1055 = vmatpush.msra.mxu0 0.0
    %1056 = vmatpush.msra.mxu0 %v819
    %1057 = vmatpush.msra.mxu0 %v818
    %1058 = vmatpush.msra.mxu0 %v817
    %1059 = vmatpush.msra.mxu0 %v816
    %1060 = vmatmul.f32.gmra.mxu0 %v1042
    %v1061 = vpop.f32.mrf.mxu0
    %v1062 = vadd.f32 0.0, %v1061
    %1063 = vdwg.mxu0
    %v1065 = vrot.slane %v1062, 2
    %v1067 = vadd.f32 %v810, %v1065
    %v1068 = vxor.u32 %v1067, 2147483648
    %v1069 = vmul.f32 %v1068, 1.442695
    %v1070 = vpow.pop %v1069
    %v1071 = vadd.f32 %v1070, 1.0
    %v1072 = vrcp.pop %v1071
    %v1073 = vmul.f32 %v1071, %v1072
    %v1074 = vsub.f32 1.0, %v1073
    %v1075 = vmul.f32 %v1072, %v1074
    %v1076 = vadd.f32 %v1072, %v1075
    %vm1077 = vweird.f32 %v1071
    %vm1078 = vweird.f32 %v1072
    %vm1079 = vmor %vm1077, %vm1078
    %v1080 = vsel %vm1079, %v1072, %v1076
    %v1081 = vand.u32 2147483647, %v1071
    %vm1082 = vcmp.eq.f32.partialorder %v1081, 8.507059e+37
    %v1083 = vand.u32 %v1071, 2147483648
    %v1084 = vor.u32 1.1754944e-38, %v1083
    %v1085 = vsel %vm1082, %v1084, %v1080
    %v1086 = vmul.f32 1.0, %v1085
    %v1087 = vtanh.pop %v1067
    %v1089 = vrot.slane %v1027, 6
    %v1091 = vmul.f32 %v1086, %v1089
    %1093 = vrot.lane.b32.xlu0 %v1087, 32
    %v1094 = vpop.permute.xlu0 %1093
    %v1096 = vmul.f32 %v1086, %v1094
    %1098 = vrot.lane.b32.xlu0 %v1096, 32
    %v1099 = vpop.permute.xlu0 %1098
    %v1101 = vadd.f32 %v1091, %v1099
    %v1102 = vtanh.pop %v1101
    %1104 = vrot.lane.b32.xlu0 %v1102, 32
    %v1105 = vpop.permute.xlu0 %1104
    %v1107 = vmul.f32 %v1086, %v1105
    %1109 = vrot.lane.b32.xlu0 %v1107, 64
    %v1110 = vpop.permute.xlu0 %1109
    %1112 = vst.msk [vmem:[#allocation2] sm:$0xc0] %vm476, %v1110
    %v1113 = vrot.slane %v1107, 6
    %1114 = vrot.lane.b32.xlu0 %v1113, 64
    %v1115 = vpop.permute.xlu0 %1114
    %v1116 = vsel %vm151, %v1115, 0
    %1118 = vmatpush.msra.mxu0 0.0
    %1119 = vmatpush.msra.mxu0 0.0
    %1120 = vmatpush.msra.mxu0 0.0
    %1121 = vmatpush.msra.mxu0 0.0
    %1122 = vmatpush.msra.mxu0 0.0
    %1123 = vmatpush.msra.mxu0 0.0
    %1124 = vmatpush.msra.mxu0 0.0
    %1125 = vmatpush.msra.mxu0 0.0
    %1126 = vmatpush.msra.mxu0 0.0
    %1127 = vmatpush.msra.mxu0 0.0
    %1128 = vmatpush.msra.mxu0 0.0
    %1129 = vmatpush.msra.mxu0 0.0
    %1130 = vmatpush.msra.mxu0 %v819
    %1131 = vmatpush.msra.mxu0 %v818
    %1132 = vmatpush.msra.mxu0 %v817
    %1133 = vmatpush.msra.mxu0 %v816
    %1134 = vmatmul.f32.gmra.mxu0 %v1116
    %v1135 = vpop.f32.mrf.mxu0
    %v1136 = vadd.f32 0.0, %v1135
    %1137 = vdwg.mxu0
    %v1138 = vadd.f32 %v813, %v1136
    %v1139 = vxor.u32 %v1138, 2147483648
    %v1140 = vmul.f32 %v1139, 1.442695
    %v1141 = vpow.pop %v1140
    %v1142 = vadd.f32 %v1141, 1.0
    %v1143 = vrcp.pop %v1142
    %v1144 = vmul.f32 %v1142, %v1143
    %v1145 = vsub.f32 1.0, %v1144
    %v1146 = vmul.f32 %v1143, %v1145
    %v1147 = vadd.f32 %v1143, %v1146
    %vm1148 = vweird.f32 %v1142
    %vm1149 = vweird.f32 %v1143
    %vm1150 = vmor %vm1148, %vm1149
    %v1151 = vsel %vm1150, %v1143, %v1147
    %v1152 = vand.u32 2147483647, %v1142
    %vm1153 = vcmp.eq.f32.partialorder %v1152, 8.507059e+37
    %v1154 = vand.u32 %v1142, 2147483648
    %v1155 = vor.u32 1.1754944e-38, %v1154
    %v1156 = vsel %vm1153, %v1155, %v1151
    %v1157 = vmul.f32 1.0, %v1156
    %v1158 = vtanh.pop %v1138
    %v1160 = vrot.slane %v1101, 6
    %v1162 = vmul.f32 %v1157, %v1160
    %1164 = vrot.lane.b32.xlu0 %v1158, 32
    %v1165 = vpop.permute.xlu0 %1164
    %v1167 = vmul.f32 %v1157, %v1165
    %1169 = vrot.lane.b32.xlu0 %v1167, 32
    %v1170 = vpop.permute.xlu0 %1169
    %v1172 = vadd.f32 %v1162, %v1170
    %v1173 = vtanh.pop %v1172
    %1175 = vrot.lane.b32.xlu0 %v1173, 32
    %v1176 = vpop.permute.xlu0 %1175
    %v1178 = vmul.f32 %v1157, %v1176
    %1180 = vrot.lane.b32.xlu0 %v1178, 64
    %v1181 = vpop.permute.xlu0 %1180
    %1183 = vst.msk [vmem:[#allocation2 + $0x8] sm:$0x3] %vm254, %v1181
    %v1184 = vsel %vm151, %v1181, 0
    %1186 = vmatpush.msra.mxu0 0.0
    %1187 = vmatpush.msra.mxu0 0.0
    %1188 = vmatpush.msra.mxu0 0.0
    %1189 = vmatpush.msra.mxu0 0.0
    %1190 = vmatpush.msra.mxu0 0.0
    %1191 = vmatpush.msra.mxu0 0.0
    %1192 = vmatpush.msra.mxu0 0.0
    %1193 = vmatpush.msra.mxu0 0.0
    %1194 = vmatpush.msra.mxu0 0.0
    %1195 = vmatpush.msra.mxu0 0.0
    %1196 = vmatpush.msra.mxu0 0.0
    %1197 = vmatpush.msra.mxu0 0.0
    %1198 = vmatpush.msra.mxu0 %v819
    %1199 = vmatpush.msra.mxu0 %v818
    %1200 = vmatpush.msra.mxu0 %v817
    %1201 = vmatpush.msra.mxu0 %v816
    %1202 = vmatmul.f32.gmra.mxu0 %v1184
    %v1203 = vpop.f32.mrf.mxu0
    %v1204 = vadd.f32 0.0, %v1203
    %1205 = vdwg.mxu0
    %v1207 = vrot.slane %v1204, 6
    %v1209 = vadd.f32 %v813, %v1207
    %v1210 = vxor.u32 %v1209, 2147483648
    %v1211 = vmul.f32 %v1210, 1.442695
    %v1212 = vpow.pop %v1211
    %v1213 = vadd.f32 %v1212, 1.0
    %v1214 = vrcp.pop %v1213
    %v1215 = vmul.f32 %v1213, %v1214
    %v1216 = vsub.f32 1.0, %v1215
    %v1217 = vmul.f32 %v1214, %v1216
    %v1218 = vadd.f32 %v1214, %v1217
    %vm1219 = vweird.f32 %v1213
    %vm1220 = vweird.f32 %v1214
    %vm1221 = vmor %vm1219, %vm1220
    %v1222 = vsel %vm1221, %v1214, %v1218
    %v1223 = vand.u32 2147483647, %v1213
    %vm1224 = vcmp.eq.f32.partialorder %v1223, 8.507059e+37
    %v1225 = vand.u32 %v1213, 2147483648
    %v1226 = vor.u32 1.1754944e-38, %v1225
    %v1227 = vsel %vm1224, %v1226, %v1222
    %v1228 = vmul.f32 1.0, %v1227
    %v1229 = vtanh.pop %v1209
    %v1231 = vrot.slane %v1172, 6
    %v1233 = vmul.f32 %v1228, %v1231
    %1235 = vrot.lane.b32.xlu0 %v1229, 32
    %v1236 = vpop.permute.xlu0 %1235
    %v1238 = vmul.f32 %v1228, %v1236
    %1240 = vrot.lane.b32.xlu0 %v1238, 32
    %v1241 = vpop.permute.xlu0 %1240
    %v1243 = vadd.f32 %v1233, %v1241
    %v1244 = vtanh.pop %v1243
    %1246 = vrot.lane.b32.xlu0 %v1244, 32
    %v1247 = vpop.permute.xlu0 %1246
    %v1249 = vmul.f32 %v1228, %v1247
    %1251 = vrot.lane.b32.xlu0 %v1249, 64
    %v1252 = vpop.permute.xlu0 %1251
    %1254 = vst.msk [vmem:[#allocation2 + $0x8] sm:$0xc] %vm326, %v1252
    %v1255 = vrot.slane %v1249, 2
    %1256 = vrot.lane.b32.xlu0 %v1255, 64
    %v1257 = vpop.permute.xlu0 %1256
    %v1258 = vsel %vm151, %v1257, 0
    %1260 = vmatpush.msra.mxu0 0.0
    %1261 = vmatpush.msra.mxu0 0.0
    %1262 = vmatpush.msra.mxu0 0.0
    %1263 = vmatpush.msra.mxu0 0.0
    %1264 = vmatpush.msra.mxu0 0.0
    %1265 = vmatpush.msra.mxu0 0.0
    %1266 = vmatpush.msra.mxu0 0.0
    %1267 = vmatpush.msra.mxu0 0.0
    %1268 = vmatpush.msra.mxu0 0.0
    %1269 = vmatpush.msra.mxu0 0.0
    %1270 = vmatpush.msra.mxu0 0.0
    %1271 = vmatpush.msra.mxu0 0.0
    %1272 = vmatpush.msra.mxu0 %v819
    %1273 = vmatpush.msra.mxu0 %v818
    %1274 = vmatpush.msra.mxu0 %v817
    %1275 = vmatpush.msra.mxu0 %v816
    %1276 = vmatmul.f32.gmra.mxu0 %v1258
    %v1277 = vpop.f32.mrf.mxu0
    %v1278 = vadd.f32 0.0, %v1277
    %1279 = vdwg.mxu0
    %v1281 = vrot.slane %v1278, 4
    %v1283 = vadd.f32 %v813, %v1281
    %v1284 = vxor.u32 %v1283, 2147483648
    %v1285 = vmul.f32 %v1284, 1.442695
    %v1286 = vpow.pop %v1285
    %v1287 = vadd.f32 %v1286, 1.0
    %v1288 = vrcp.pop %v1287
    %v1289 = vmul.f32 %v1287, %v1288
    %v1290 = vsub.f32 1.0, %v1289
    %v1291 = vmul.f32 %v1288, %v1290
    %v1292 = vadd.f32 %v1288, %v1291
    %vm1293 = vweird.f32 %v1287
    %vm1294 = vweird.f32 %v1288
    %vm1295 = vmor %vm1293, %vm1294
    %v1296 = vsel %vm1295, %v1288, %v1292
    %v1297 = vand.u32 2147483647, %v1287
    %vm1298 = vcmp.eq.f32.partialorder %v1297, 8.507059e+37
    %v1299 = vand.u32 %v1287, 2147483648
    %v1300 = vor.u32 1.1754944e-38, %v1299
    %v1301 = vsel %vm1298, %v1300, %v1296
    %v1302 = vmul.f32 1.0, %v1301
    %v1303 = vtanh.pop %v1283
    %v1305 = vrot.slane %v1243, 6
    %v1307 = vmul.f32 %v1302, %v1305
    %1309 = vrot.lane.b32.xlu0 %v1303, 32
    %v1310 = vpop.permute.xlu0 %1309
    %v1312 = vmul.f32 %v1302, %v1310
    %1314 = vrot.lane.b32.xlu0 %v1312, 32
    %v1315 = vpop.permute.xlu0 %1314
    %v1317 = vadd.f32 %v1307, %v1315
    %v1318 = vtanh.pop %v1317
    %1320 = vrot.lane.b32.xlu0 %v1318, 32
    %v1321 = vpop.permute.xlu0 %1320
    %v1323 = vmul.f32 %v1302, %v1321
    %1325 = vrot.lane.b32.xlu0 %v1323, 64
    %v1326 = vpop.permute.xlu0 %1325
    %1328 = vst.msk [vmem:[#allocation2 + $0x8] sm:$0x30] %vm401, %v1326
    %v1329 = vrot.slane %v1323, 4
    %1330 = vrot.lane.b32.xlu0 %v1329, 64
    %v1331 = vpop.permute.xlu0 %1330
    %v1332 = vsel %vm151, %v1331, 0
    %1334 = vmatpush.msra.mxu0 0.0
    %1335 = vmatpush.msra.mxu0 0.0
    %1336 = vmatpush.msra.mxu0 0.0
    %1337 = vmatpush.msra.mxu0 0.0
    %1338 = vmatpush.msra.mxu0 0.0
    %1339 = vmatpush.msra.mxu0 0.0
    %1340 = vmatpush.msra.mxu0 0.0
    %1341 = vmatpush.msra.mxu0 0.0
    %1342 = vmatpush.msra.mxu0 0.0
    %1343 = vmatpush.msra.mxu0 0.0
    %1344 = vmatpush.msra.mxu0 0.0
    %1345 = vmatpush.msra.mxu0 0.0
    %1346 = vmatpush.msra.mxu0 %v819
    %1347 = vmatpush.msra.mxu0 %v818
    %1348 = vmatpush.msra.mxu0 %v817
    %1349 = vmatpush.msra.mxu0 %v816
    %1350 = vmatmul.f32.gmra.mxu0 %v1332
    %v1351 = vpop.f32.mrf.mxu0
    %v1352 = vadd.f32 0.0, %v1351
    %1353 = vdwg.mxu0
    %v1355 = vrot.slane %v1352, 2
    %v1357 = vadd.f32 %v813, %v1355
    %v1358 = vxor.u32 %v1357, 2147483648
    %v1359 = vmul.f32 %v1358, 1.442695
    %v1360 = vpow.pop %v1359
    %v1361 = vadd.f32 %v1360, 1.0
    %v1362 = vrcp.pop %v1361
    %v1363 = vmul.f32 %v1361, %v1362
    %v1364 = vsub.f32 1.0, %v1363
    %v1365 = vmul.f32 %v1362, %v1364
    %v1366 = vadd.f32 %v1362, %v1365
    %vm1367 = vweird.f32 %v1361
    %vm1368 = vweird.f32 %v1362
    %vm1369 = vmor %vm1367, %vm1368
    %v1370 = vsel %vm1369, %v1362, %v1366
    %v1371 = vand.u32 2147483647, %v1361
    %vm1372 = vcmp.eq.f32.partialorder %v1371, 8.507059e+37
    %v1373 = vand.u32 %v1361, 2147483648
    %v1374 = vor.u32 1.1754944e-38, %v1373
    %v1375 = vsel %vm1372, %v1374, %v1370
    %v1376 = vmul.f32 1.0, %v1375
    %v1377 = vtanh.pop %v1357
    %v1379 = vrot.slane %v1317, 6
    %v1381 = vmul.f32 %v1376, %v1379
    %1383 = vrot.lane.b32.xlu0 %v1377, 32
    %v1384 = vpop.permute.xlu0 %1383
    %v1386 = vmul.f32 %v1376, %v1384
    %1388 = vrot.lane.b32.xlu0 %v1386, 32
    %v1389 = vpop.permute.xlu0 %1388
    %v1391 = vadd.f32 %v1381, %v1389
    %v1392 = vtanh.pop %v1391
    %1394 = vrot.lane.b32.xlu0 %v1392, 32
    %v1395 = vpop.permute.xlu0 %1394
    %v1397 = vmul.f32 %v1376, %v1395
    %1399 = vrot.lane.b32.xlu0 %v1397, 64
    %v1400 = vpop.permute.xlu0 %1399
    %1402 = vst.msk [vmem:[#allocation2 + $0x8] sm:$0xc0] %vm476, %v1400
    %s1403 = scalar_lea.vmem [#allocation3], 2
    %1404 = vst.msk [vmem:[%s1403 - $0x6] sm:$0xc0] %vm476, %v1400
    %1406 = vrot.lane.b32.xlu0 %v1391, 96
    %v1407 = vpop.permute.xlu0 %1406
    %s1409 = scalar_lea.vmem [#allocation5], 2
    %1410 = vst.msk [vmem:[%s1409 - $0x6] sm:$0xc0] %vm476, %v1407
    %v1411 = vld [vmem:[#allocation2] sm:$0xff]
    %v1412 = vld [vmem:[#allocation2 + $0x8] sm:$0xff]
    %v1413 = vld [vmem:[%s10] sm:$0xff]
    %v1414 = vld [vmem:[%s10 + $0x8] sm:$0xff]
    %v1415 = vld [vmem:[%s10 + $0x10] sm:$0xff]
    %v1416 = vld [vmem:[%s10 + $0x18] sm:$0xff]
    %v1417 = vld [vmem:[%s11] sm:$0xff]
    %v1418 = vld [vmem:[%s11 + $0x8] sm:$0xff]
    %v1419 = vld [vmem:[%s11 + $0x10] sm:$0xff]
    %v1420 = vld [vmem:[%s11 + $0x18] sm:$0xff]
    %v1422 = vsel %vm151, %v1411, 0
    %v1425 = vsel %vm151, %v1412, 0
    %1427 = vmatpush.msra.mxu0 0.0
    %1428 = vmatpush.msra.mxu0 0.0
    %1429 = vmatpush.msra.mxu0 0.0
    %1430 = vmatpush.msra.mxu0 0.0
    %1431 = vmatpush.msra.mxu0 0.0
    %1432 = vmatpush.msra.mxu0 0.0
    %1433 = vmatpush.msra.mxu0 0.0
    %1434 = vmatpush.msra.mxu0 0.0
    %1435 = vmatpush.msra.mxu0 0.0
    %1436 = vmatpush.msra.mxu0 0.0
    %1437 = vmatpush.msra.mxu0 0.0
    %1438 = vmatpush.msra.mxu0 0.0
    %1439 = vmatpush.msra.mxu0 %v1420
    %1440 = vmatpush.msra.mxu0 %v1419
    %1441 = vmatpush.msra.mxu0 %v1418
    %1442 = vmatpush.msra.mxu0 %v1417
    %1443 = vmatmul.f32.gmra.mxu0 %v1422
    %v1444 = vpop.f32.mrf.mxu0
    %v1445 = vadd.f32 0.0, %v1444
    %1446 = vmatmul.f32.gmra.mxu0 %v1425
    %v1447 = vpop.f32.mrf.mxu0
    %v1448 = vadd.f32 0.0, %v1447
    %1449 = vdwg.mxu0
    %v1450 = vsel %vm151, %v135, 0
    %v1452 = vsel %vm151, %v136, 0
    %1454 = vmatpush.msra.mxu0 0.0
    %1455 = vmatpush.msra.mxu0 0.0
    %1456 = vmatpush.msra.mxu0 0.0
    %1457 = vmatpush.msra.mxu0 0.0
    %1458 = vmatpush.msra.mxu0 0.0
    %1459 = vmatpush.msra.mxu0 0.0
    %1460 = vmatpush.msra.mxu0 0.0
    %1461 = vmatpush.msra.mxu0 0.0
    %1462 = vmatpush.msra.mxu0 0.0
    %1463 = vmatpush.msra.mxu0 0.0
    %1464 = vmatpush.msra.mxu0 0.0
    %1465 = vmatpush.msra.mxu0 0.0
    %1466 = vmatpush.msra.mxu0 %v1416
    %1467 = vmatpush.msra.mxu0 %v1415
    %1468 = vmatpush.msra.mxu0 %v1414
    %1469 = vmatpush.msra.mxu0 %v1413
    %1470 = vmatmul.f32.gmra.mxu0 %v1450
    %v1471 = vpop.f32.mrf.mxu0
    %v1472 = vadd.f32 %v1445, %v1471
    %1473 = vmatmul.f32.gmra.mxu0 %v1452
    %v1474 = vpop.f32.mrf.mxu0
    %v1475 = vadd.f32 %v1448, %v1474
    %1476 = vdwg.mxu0
    %v1477 = vld [vmem:[%s12] sm:$0x1]
    %v1479 = vperm.slane %v1477, 0
    %v1481 = vadd.f32 %v1472, %v1479
    %v1482 = vadd.f32 %v1475, %v1479
    %v1483 = vmax.f32 %v1481, 0.0
    %v1484 = vmax.f32 %v1482, 0.0
    %v1485 = vld [vmem:[%s13] sm:$0xff]
    %v1486 = vld [vmem:[%s13 + $0x8] sm:$0xff]
    %v1487 = vld [vmem:[%s13 + $0x10] sm:$0xff]
    %v1488 = vld [vmem:[%s13 + $0x18] sm:$0xff]
    %v1489 = vld [vmem:[%s14] sm:$0x1]
    %v1491 = vperm.slane %v1489, 0
    %v1494 = vsel %vm151, %v1483, 0
    %v1497 = vsel %vm151, %v1484, 0
    %1499 = vmatpush.msra.mxu0 0.0
    %1500 = vmatpush.msra.mxu0 0.0
    %1501 = vmatpush.msra.mxu0 0.0
    %1502 = vmatpush.msra.mxu0 0.0
    %1503 = vmatpush.msra.mxu0 0.0
    %1504 = vmatpush.msra.mxu0 0.0
    %1505 = vmatpush.msra.mxu0 0.0
    %1506 = vmatpush.msra.mxu0 0.0
    %1507 = vmatpush.msra.mxu0 0.0
    %1508 = vmatpush.msra.mxu0 0.0
    %1509 = vmatpush.msra.mxu0 0.0
    %1510 = vmatpush.msra.mxu0 0.0
    %1511 = vmatpush.msra.mxu0 %v1488
    %1512 = vmatpush.msra.mxu0 %v1487
    %1513 = vmatpush.msra.mxu0 %v1486
    %1514 = vmatpush.msra.mxu0 %v1485
    %1515 = vmatmul.f32.gmra.mxu0 %v1494
    %v1516 = vpop.f32.mrf.mxu0
    %v1517 = vadd.f32 %v1491, %v1516
    %1518 = vmatmul.f32.gmra.mxu0 %v1497
    %v1519 = vpop.f32.mrf.mxu0
    %v1520 = vadd.f32 %v1491, %v1519
    %1521 = vdwg.mxu0
    %v1522 = vtanh.pop %v1517
    %v1523 = vtanh.pop %v1520
    %1524 = vst.msk [vmem:[%s15] sm:$0xff] %vm62, %v1522
    %1525 = vst.msk [vmem:[%s15 + $0x8] sm:$0xff] %vm62, %v1523
    // Predicated region
    $region62: #{actor_forward.1} parent=1 // pred_check
      _
    $region63: #{actor_forward.1} parent=1 // pred_check_branch
      %1527 = sbr.rel (0) target = $region65
    $region64: #{actor_forward.1} parent=1 // pred_region
      _
    $region65: #{actor_forward.1} parent=1 // pred_fallthru
      _
    // Predicated region
    $region66: #{actor_forward.1} parent=1 // pred_check
      _
    $region67: #{actor_forward.1} parent=1 // pred_check_branch
      %1529 = sbr.rel (0) target = $region69
    $region68: #{actor_forward.1} parent=1 // pred_region
      %1531 = vsyncadd [#allocation4], 0
      %s1532 = sshll.u32 [#allocation3], 4
      %s1533 = int_to_ptr.vmem [resolvable:$true] %s1532
      %s1534 = sshll.u32 %s16, 4
      %s1535 = int_to_ptr.hbm [resolvable:$true] %s1534
      %1540 = dma.vmem_to_hbm [thread:$0]  %s1533, 64, %s1535, [#allocation4], 32, 32, 2
    $region69: #{actor_forward.1} parent=1 // pred_fallthru
      _
    // Predicated region
    $region70: #{actor_forward.1} parent=1 // pred_check
      _
    $region71: #{actor_forward.1} parent=1 // pred_check_branch
      %1542 = sbr.rel (0) target = $region73
    $region72: #{actor_forward.1} parent=1 // pred_region
      %1544 = vsyncadd [#allocation6], 0
      %s1545 = sshll.u32 [#allocation5], 4
      %s1546 = int_to_ptr.vmem [resolvable:$true] %s1545
      %s1547 = sshll.u32 %s17, 4
      %s1548 = int_to_ptr.hbm [resolvable:$true] %s1547
      %1553 = dma.vmem_to_hbm [thread:$0]  %s1546, 64, %s1548, [#allocation6], 32, 32, 2
    $region73: #{actor_forward.1} parent=1 // pred_fallthru
      _
    // Predicated region
    $region74: #{actor_forward.1} parent=1 // pred_check
      _
    $region75: #{actor_forward.1} parent=1 // pred_check_branch
      %1555 = sbr.rel (0) target = $region77
    $region76: #{actor_forward.1} parent=1 // pred_region
      _
    $region77: #{actor_forward.1} parent=1 // pred_fallthru
      _
    // Predicated region
    $region78: #{actor_forward.1} parent=1 // pred_check
      _
    $region79: #{actor_forward.1} parent=1 // pred_check_branch
      %1557 = sbr.rel (0) target = $region81
    $region80: #{actor_forward.1} parent=1 // pred_region
      %1559 = dma.done [#allocation4], 64
    $region81: #{actor_forward.1} parent=1 // pred_fallthru
      _
    // Predicated region
    $region82: #{actor_forward.1} parent=1 // pred_check
      _
    $region83: #{actor_forward.1} parent=1 // pred_check_branch
      %1561 = sbr.rel (0) target = $region85
    $region84: #{actor_forward.1} parent=1 // pred_region
      %1563 = dma.done [#allocation6], 64
    $region85: #{actor_forward.1} parent=1 // pred_fallthru
      _
    %1564 = vsyncpa [#allocation4], 1
    %1565 = vsyncpa [#allocation6], 1

</llo_original>
